<compile_context>
chip_gen: v6e
topology: v6e:2x2x1
jax: 0.10.0
libtpu: 0.0.40
codegen_flags: <defaults>
</compile_context>

<pallas_src>
import functools

import jax
import jax.numpy as jnp
import numpy as np
from jax.experimental import pallas as pl
from jax.experimental.pallas import tpu as pltpu


# ----------------------------------------------------------------------------
# Fused PairVAE kernel: 1 encoder chain + 1 decoder chain, all in VMEM.
# ----------------------------------------------------------------------------
def _pair_vae_kernel(d_a, d_b, hidden, latent,
                     x_ref, eps_ref,
                     we1_ref, wmulv_ref, wd1_ref, wd2_ref, bias_ref,
                     out_ref):
    B = x_ref.shape[0]
    L = latent
    H2 = 2 * hidden
    L2 = 2 * latent
    L4 = 4 * latent
    D = d_a + d_b

    dot = functools.partial(jnp.dot, preferred_element_type=jnp.float32,
                            precision=jax.lax.Precision.HIGHEST)

    # ---- unpack bias slab (static lane slices; XLU slot is idle here) ----
    be1 = bias_ref[:, 0:H2]                       # [be1_a | be1_b]
    bmulv = bias_ref[:, H2:H2 + L4]               # [bmulv_a | bmulv_b]
    bd1 = bias_ref[:, H2 + L4:H2 + L4 + H2]       # [bd1_a | bd1_b]
    bd2 = bias_ref[:, H2 + L4 + H2:H2 + L4 + H2 + D]  # [bd2_a | bd2_b]

    # ---- fused (block-diagonal) encoders: one chain for both VAEs ----
    h = jnp.maximum(dot(x_ref[...], we1_ref[...]) + be1, 0.0)      # (B, 2H)
    mulv = dot(h, wmulv_ref[...]) + bmulv                          # (B, 4L)
    # layout: [mu_a(L) | logvar_a(L) | mu_b(L) | logvar_b(L)]

    mu_a, lv_a = mulv[:, 0:L], mulv[:, L:L2]
    mu_b, lv_b = mulv[:, L2:L2 + L], mulv[:, L2 + L:L4]

    # std computed once per VAE, reused for self + cross reparameterization
    std_a = jnp.exp(0.5 * lv_a)
    std_b = jnp.exp(0.5 * lv_b)

    eps_a = eps_ref[:, 0:L]
    eps_b = eps_ref[:, L:L2]
    eps_ac = eps_ref[:, L2:L2 + L]
    eps_bc = eps_ref[:, L2 + L:L4]

    z_a_self = mu_a + std_a * eps_a      # decoder A (self)  -> recon_a
    z_b_self = mu_b + std_b * eps_b      # decoder B (self)  -> recon_b
    z_a_cross = mu_a + std_a * eps_ac    # decoder B (cross) -> cross_recon_b
    z_b_cross = mu_b + std_b * eps_bc    # decoder A (cross) -> cross_recon_a

    # ---- fused decoders: rows = [self ; cross], columns = block-diag A/B ----
    z_dec_a = jnp.concatenate([z_a_self, z_b_cross], axis=0)       # (2B, L)
    z_dec_b = jnp.concatenate([z_b_self, z_a_cross], axis=0)       # (2B, L)
    z = jnp.concatenate([z_dec_a, z_dec_b], axis=1)                # (2B, 2L)

    hd = jnp.maximum(dot(z, wd1_ref[...]) + bd1, 0.0)              # (2B, 2H)
    dec = dot(hd, wd2_ref[...]) + bd2                              # (2B, D)

    recon_a = dec[:B, 0:d_a]        # decoder A on z_a_self
    cross_a = dec[B:, 0:d_a]        # decoder A on z_b_cross
    recon_b = dec[:B, d_a:D]        # decoder B on z_b_self
    cross_b = dec[B:, d_a:D]        # decoder B on z_a_cross

    # ---- single lane-dense store of all six outputs ----
    out_ref[...] = jnp.concatenate(
        [recon_a, cross_a, recon_b, cross_b, mulv], axis=1)


# ----------------------------------------------------------------------------
# Wrapper: pack operands into a handful of slabs, single pallas_call,
# whole-array VMEM operands, no grid (tiny problem, no pipelining needed).
# ----------------------------------------------------------------------------
def _block_diag(a, b):
    m1, n1 = a.shape
    m2, n2 = b.shape
    top = jnp.concatenate([a, jnp.zeros((m1, n2), a.dtype)], axis=1)
    bot = jnp.concatenate([jnp.zeros((m2, n1), b.dtype), b], axis=1)
    return jnp.concatenate([top, bot], axis=0)


@jax.jit
def pair_vae_forward(data_a, data_b, params_a, params_b,
                     eps_a, eps_b, eps_a_cross, eps_b_cross):
    B, D_A = data_a.shape
    D_B = data_b.shape[1]
    L = eps_a.shape[1]
    H = params_a["We1"].shape[1]
    assert params_b["We1"].shape[1] == H, "equal hidden sizes assumed"
    D = D_A + D_B
    W = 2 * D_A + 2 * D_B + 4 * L    # output slab width (=256 for the demo)

    # ---- wrapper-side packing (pure layout, tiny) ----
    x = jnp.concatenate([data_a, data_b], axis=1)                         # (B, D)
    eps = jnp.concatenate([eps_a, eps_b, eps_a_cross, eps_b_cross],
                          axis=1)                                         # (B, 4L)
    we1 = _block_diag(params_a["We1"], params_b["We1"])                   # (D, 2H)
    wmulv = _block_diag(params_a["Wmulv"], params_b["Wmulv"])             # (2H, 4L)
    wd1 = _block_diag(params_a["Wd1"], params_b["Wd1"])                   # (2L, 2H)
    wd2 = _block_diag(params_a["Wd2"], params_b["Wd2"])                   # (2H, D)
    bias = jnp.concatenate(
        [params_a["be1"], params_b["be1"],
         params_a["bmulv"], params_b["bmulv"],
         params_a["bd1"], params_b["bd1"],
         params_a["bd2"], params_b["bd2"]], axis=1)                       # (1, 4H+4L+D)

    # ---- advisory cost estimate for XLA scheduling ----
    flops = 2 * (B * D * 2 * H          # encoder matmul 1
                 + B * 2 * H * 4 * L    # encoder matmul 2 (mu|logvar head)
                 + 2 * B * 2 * L * 2 * H  # decoder matmul 1
                 + 2 * B * 2 * H * D)     # decoder matmul 2
    transcendentals = B * 2 * L          # the two exp(0.5*logvar)
    in_elems = (x.size + eps.size + we1.size + wmulv.size + wd1.size
                + wd2.size + bias.size)
    bytes_accessed = 4 * (in_elems + B * W)

    vmem = pl.BlockSpec(memory_space=pltpu.MemorySpace.VMEM)
    ins = (x, eps, we1, wmulv, wd1, wd2, bias)

    slab = pl.pallas_call(
        functools.partial(_pair_vae_kernel, D_A, D_B, H, L),
        out_shape=jax.ShapeDtypeStruct((B, W), jnp.float32),
        in_specs=[vmem] * len(ins),
        out_specs=vmem,
        cost_estimate=pl.CostEstimate(flops=flops,
                                      transcendentals=transcendentals,
                                      bytes_accessed=bytes_accessed),
    )(*ins)

    # ---- free layout slicing in the wrapper ----
    recon_a = slab[:, 0:D_A]
    cross_a = slab[:, D_A:2 * D_A]
    recon_b = slab[:, 2 * D_A:2 * D_A + D_B]
    cross_b = slab[:, 2 * D_A + D_B:2 * (D_A + D_B)]
    o = 2 * (D_A + D_B)
    mu_a = slab[:, o:o + L]
    logvar_a = slab[:, o + L:o + 2 * L]
    mu_b = slab[:, o + 2 * L:o + 3 * L]
    logvar_b = slab[:, o + 3 * L:o + 4 * L]

    return {
        "data_a": data_a, "recon_a": recon_a,
        "data_b": data_b, "recon_b": recon_b,
        "cross_recon_a": cross_a, "cross_recon_b": cross_b,
        "mu_a": mu_a, "logvar_a": logvar_a,
        "mu_b": mu_b, "logvar_b": logvar_b,
    }


# ----------------------------------------------------------------------------
# Parameter construction (deterministic, in-script)
# ----------------------------------------------------------------------------
def make_vae_params(key, d_in, hidden, latent):
    ks = jax.random.split(key, 4)
    s = 0.05
    return {
        "We1": s * jax.random.normal(ks[0], (d_in, hidden), jnp.float32),
        "be1": jnp.zeros((1, hidden), jnp.float32),
        # merged mu|logvar head: [hidden, 2*latent]
        "Wmulv": s * jax.random.normal(ks[1], (hidden, 2 * latent), jnp.float32),
        "bmulv": jnp.zeros((1, 2 * latent), jnp.float32),
        "Wd1": s * jax.random.normal(ks[2], (latent, hidden), jnp.float32),
        "bd1": jnp.zeros((1, hidden), jnp.float32),
        "Wd2": s * jax.random.normal(ks[3], (hidden, d_in), jnp.float32),
        "bd2": jnp.zeros((1, d_in), jnp.float32),
    }


# ----------------------------------------------------------------------------
# Pure-JAX reference (for a tolerance check of the fused kernel)
# ----------------------------------------------------------------------------
def _ref_forward(data_a, data_b, params_a, params_b,
                 eps_a, eps_b, eps_a_cross, eps_b_cross, latent):
    dot = functools.partial(jnp.dot, precision=jax.lax.Precision.HIGHEST)

    def enc(x, p):
        h = jnp.maximum(dot(x, p["We1"]) + p["be1"], 0.0)
        mulv = dot(h, p["Wmulv"]) + p["bmulv"]
        return mulv[:, :latent], mulv[:, latent:]

    def dec(z, p):
        h = jnp.maximum(dot(z, p["Wd1"]) + p["bd1"], 0.0)
        return dot(h, p["Wd2"]) + p["bd2"]

    mu_a, lv_a = enc(data_a, params_a)
    mu_b, lv_b = enc(data_b, params_b)
    std_a, std_b = jnp.exp(0.5 * lv_a), jnp.exp(0.5 * lv_b)
    return {
        "recon_a": dec(mu_a + std_a * eps_a, params_a),
        "recon_b": dec(mu_b + std_b * eps_b, params_b),
        "cross_recon_b": dec(mu_a + std_a * eps_a_cross, params_b),
        "cross_recon_a": dec(mu_b + std_b * eps_b_cross, params_a),
        "mu_a": mu_a, "logvar_a": lv_a, "mu_b": mu_b, "logvar_b": lv_b,
    }


if __name__ == "__main__":
    # latent dims must match between vae_a and vae_b for cross decoding
    B, D_A, D_B, HIDDEN, LATENT = 4, 64, 32, 32, 16

    root = jax.random.PRNGKey(0)
    k_da, k_db, k_pa, k_pb, k_ea, k_eb, k_eac, k_ebc = jax.random.split(root, 8)

    data_a = jax.random.normal(k_da, (B, D_A), jnp.float32)
    data_b = jax.random.normal(k_db, (B, D_B), jnp.float32)

    params_a = make_vae_params(k_pa, D_A, HIDDEN, LATENT)
    params_b = make_vae_params(k_pb, D_B, HIDDEN, LATENT)

    # deterministic reparameterization noise (stands in for torch.randn_like)
    eps_a = jax.random.normal(k_ea, (B, LATENT), jnp.float32)
    eps_b = jax.random.normal(k_eb, (B, LATENT), jnp.float32)
    eps_a_cross = jax.random.normal(k_eac, (B, LATENT), jnp.float32)
    eps_b_cross = jax.random.normal(k_ebc, (B, LATENT), jnp.float32)

    out = pair_vae_forward(data_a, data_b, params_a, params_b,
                           eps_a, eps_b, eps_a_cross, eps_b_cross)
    jax.block_until_ready(out)

    # shape / dtype checks
    assert out["recon_a"].shape == (B, D_A)
    assert out["recon_b"].shape == (B, D_B)
    assert out["cross_recon_a"].shape == (B, D_A)
    assert out["cross_recon_b"].shape == (B, D_B)
    assert out["mu_a"].shape == (B, LATENT) and out["logvar_a"].shape == (B, LATENT)
    assert out["mu_b"].shape == (B, LATENT) and out["logvar_b"].shape == (B, LATENT)
    assert all(v.dtype == jnp.float32 for v in out.values())

    # numerical check against a pure-JAX reference (tight tol; both sides f32)
    ref = _ref_forward(data_a, data_b, params_a, params_b,
                       eps_a, eps_b, eps_a_cross, eps_b_cross, LATENT)
    for k, v in ref.items():
        np.testing.assert_allclose(np.asarray(out[k]), np.asarray(v),
                                   rtol=1e-5, atol=1e-6, err_msg=k)

    print("KERNEL_OK")
</pallas_src>

<mosaic_0001>
module attributes {stable_mosaic.version = 11 : i64} {
  func.func @_pair_vae_kernel(%arg0: memref<4x96xf32, #tpu.memory_space<vmem>>, %arg1: memref<4x64xf32, #tpu.memory_space<vmem>>, %arg2: memref<96x64xf32, #tpu.memory_space<vmem>>, %arg3: memref<64x64xf32, #tpu.memory_space<vmem>>, %arg4: memref<32x64xf32, #tpu.memory_space<vmem>>, %arg5: memref<64x96xf32, #tpu.memory_space<vmem>>, %arg6: memref<1x288xf32, #tpu.memory_space<vmem>>, %arg7: memref<4x256xf32, #tpu.memory_space<vmem>>) attributes {dimension_semantics = [], scalar_prefetch = 0 : i64, scratch_operands = 0 : i64, tpu.core_type = #tpu.core_type<tc>} {
    %c0 = arith.constant 0 : index
    %c0_0 = arith.constant 0 : index
    %0 = vector.load %arg6[%c0, %c0_0] : memref<1x288xf32, #tpu.memory_space<vmem>>, vector<1x64xf32>
    %c0_1 = arith.constant 0 : index
    %c64 = arith.constant 64 : index
    %1 = vector.load %arg6[%c0_1, %c64] : memref<1x288xf32, #tpu.memory_space<vmem>>, vector<1x64xf32>
    %c0_2 = arith.constant 0 : index
    %c128 = arith.constant 128 : index
    %2 = vector.load %arg6[%c0_2, %c128] : memref<1x288xf32, #tpu.memory_space<vmem>>, vector<1x64xf32>
    %c0_3 = arith.constant 0 : index
    %c192 = arith.constant 192 : index
    %3 = vector.load %arg6[%c0_3, %c192] : memref<1x288xf32, #tpu.memory_space<vmem>>, vector<1x96xf32>
    %c0_4 = arith.constant 0 : index
    %c0_5 = arith.constant 0 : index
    %4 = vector.load %arg0[%c0_4, %c0_5] : memref<4x96xf32, #tpu.memory_space<vmem>>, vector<4x96xf32>
    %c0_6 = arith.constant 0 : index
    %c0_7 = arith.constant 0 : index
    %5 = vector.load %arg2[%c0_6, %c0_7] : memref<96x64xf32, #tpu.memory_space<vmem>>, vector<96x64xf32>
    %cst = arith.constant dense<0.000000e+00> : vector<4x64xf32>
    %6 = tpu.matmul %4, %5, %cst {dimension_numbers = #tpu.dot_dimension_numbers<[1], [0], [0], [1], [0, 0, 1, 1], [], []>, precision = #tpu.contract_precision<fp32>} : vector<4x96xf32>, vector<96x64xf32>, vector<4x64xf32> -> vector<4x64xf32>
    %7 = vector.broadcast %0 : vector<1x64xf32> to vector<4x64xf32>
    %8 = arith.addf %6, %7 : vector<4x64xf32>
    %cst_8 = arith.constant 0.000000e+00 : f32
    %9 = vector.broadcast %cst_8 : f32 to vector<4x64xf32>
    %10 = arith.maximumf %8, %9 : vector<4x64xf32>
    %c0_9 = arith.constant 0 : index
    %c0_10 = arith.constant 0 : index
    %11 = vector.load %arg3[%c0_9, %c0_10] : memref<64x64xf32, #tpu.memory_space<vmem>>, vector<64x64xf32>
    %cst_11 = arith.constant dense<0.000000e+00> : vector<4x64xf32>
    %12 = tpu.matmul %10, %11, %cst_11 {dimension_numbers = #tpu.dot_dimension_numbers<[1], [0], [0], [1], [0, 0, 1, 1], [], []>, precision = #tpu.contract_precision<fp32>} : vector<4x64xf32>, vector<64x64xf32>, vector<4x64xf32> -> vector<4x64xf32>
    %13 = vector.broadcast %1 : vector<1x64xf32> to vector<4x64xf32>
    %14 = arith.addf %12, %13 : vector<4x64xf32>
    %15 = vector.extract_strided_slice %14 {offsets = [0, 0], sizes = [4, 16], strides = [1, 1]} : vector<4x64xf32> to vector<4x16xf32>
    %16 = vector.extract_strided_slice %14 {offsets = [0, 16], sizes = [4, 16], strides = [1, 1]} : vector<4x64xf32> to vector<4x16xf32>
    %17 = vector.extract_strided_slice %14 {offsets = [0, 32], sizes = [4, 16], strides = [1, 1]} : vector<4x64xf32> to vector<4x16xf32>
    %18 = vector.extract_strided_slice %14 {offsets = [0, 48], sizes = [4, 16], strides = [1, 1]} : vector<4x64xf32> to vector<4x16xf32>
    %cst_12 = arith.constant 5.000000e-01 : f32
    %19 = vector.broadcast %cst_12 : f32 to vector<4x16xf32>
    %20 = arith.mulf %19, %16 : vector<4x16xf32>
    %21 = math.exp %20 : vector<4x16xf32>
    %cst_13 = arith.constant 5.000000e-01 : f32
    %22 = vector.broadcast %cst_13 : f32 to vector<4x16xf32>
    %23 = arith.mulf %22, %18 : vector<4x16xf32>
    %24 = math.exp %23 : vector<4x16xf32>
    %c0_14 = arith.constant 0 : index
    %c0_15 = arith.constant 0 : index
    %25 = vector.load %arg1[%c0_14, %c0_15] : memref<4x64xf32, #tpu.memory_space<vmem>>, vector<4x16xf32>
    %c0_16 = arith.constant 0 : index
    %c16 = arith.constant 16 : index
    %26 = vector.load %arg1[%c0_16, %c16] : memref<4x64xf32, #tpu.memory_space<vmem>>, vector<4x16xf32>
    %c0_17 = arith.constant 0 : index
    %c32 = arith.constant 32 : index
    %27 = vector.load %arg1[%c0_17, %c32] : memref<4x64xf32, #tpu.memory_space<vmem>>, vector<4x16xf32>
    %c0_18 = arith.constant 0 : index
    %c48 = arith.constant 48 : index
    %28 = vector.load %arg1[%c0_18, %c48] : memref<4x64xf32, #tpu.memory_space<vmem>>, vector<4x16xf32>
    %29 = arith.mulf %21, %25 : vector<4x16xf32>
    %30 = arith.addf %15, %29 : vector<4x16xf32>
    %31 = arith.mulf %24, %26 : vector<4x16xf32>
    %32 = arith.addf %17, %31 : vector<4x16xf32>
    %33 = arith.mulf %21, %27 : vector<4x16xf32>
    %34 = arith.addf %15, %33 : vector<4x16xf32>
    %35 = arith.mulf %24, %28 : vector<4x16xf32>
    %36 = arith.addf %17, %35 : vector<4x16xf32>
    %37 = tpu.concatenate %30, %36 in 0 : vector<4x16xf32>, vector<4x16xf32> -> vector<8x16xf32>
    %38 = tpu.concatenate %32, %34 in 0 : vector<4x16xf32>, vector<4x16xf32> -> vector<8x16xf32>
    %39 = tpu.concatenate %37, %38 in 1 : vector<8x16xf32>, vector<8x16xf32> -> vector<8x32xf32>
    %c0_19 = arith.constant 0 : index
    %c0_20 = arith.constant 0 : index
    %40 = vector.load %arg4[%c0_19, %c0_20] : memref<32x64xf32, #tpu.memory_space<vmem>>, vector<32x64xf32>
    %cst_21 = arith.constant dense<0.000000e+00> : vector<8x64xf32>
    %41 = tpu.matmul %39, %40, %cst_21 {dimension_numbers = #tpu.dot_dimension_numbers<[1], [0], [0], [1], [0, 0, 1, 1], [], []>, precision = #tpu.contract_precision<fp32>} : vector<8x32xf32>, vector<32x64xf32>, vector<8x64xf32> -> vector<8x64xf32>
    %42 = vector.broadcast %2 : vector<1x64xf32> to vector<8x64xf32>
    %43 = arith.addf %41, %42 : vector<8x64xf32>
    %cst_22 = arith.constant 0.000000e+00 : f32
    %44 = vector.broadcast %cst_22 : f32 to vector<8x64xf32>
    %45 = arith.maximumf %43, %44 : vector<8x64xf32>
    %c0_23 = arith.constant 0 : index
    %c0_24 = arith.constant 0 : index
    %46 = vector.load %arg5[%c0_23, %c0_24] : memref<64x96xf32, #tpu.memory_space<vmem>>, vector<64x96xf32>
    %cst_25 = arith.constant dense<0.000000e+00> : vector<8x96xf32>
    %47 = tpu.matmul %45, %46, %cst_25 {dimension_numbers = #tpu.dot_dimension_numbers<[1], [0], [0], [1], [0, 0, 1, 1], [], []>, precision = #tpu.contract_precision<fp32>} : vector<8x64xf32>, vector<64x96xf32>, vector<8x96xf32> -> vector<8x96xf32>
    %48 = vector.broadcast %3 : vector<1x96xf32> to vector<8x96xf32>
    %49 = arith.addf %47, %48 : vector<8x96xf32>
    %50 = vector.extract_strided_slice %49 {offsets = [0, 0], sizes = [4, 64], strides = [1, 1]} : vector<8x96xf32> to vector<4x64xf32>
    %51 = vector.extract_strided_slice %49 {offsets = [4, 0], sizes = [4, 64], strides = [1, 1]} : vector<8x96xf32> to vector<4x64xf32>
    %52 = vector.extract_strided_slice %49 {offsets = [0, 64], sizes = [4, 32], strides = [1, 1]} : vector<8x96xf32> to vector<4x32xf32>
    %53 = vector.extract_strided_slice %49 {offsets = [4, 64], sizes = [4, 32], strides = [1, 1]} : vector<8x96xf32> to vector<4x32xf32>
    %54 = tpu.concatenate %50, %51, %52, %53, %14 in 1 : vector<4x64xf32>, vector<4x64xf32>, vector<4x32xf32>, vector<4x32xf32>, vector<4x64xf32> -> vector<4x256xf32>
    %c0_26 = arith.constant 0 : index
    %c0_27 = arith.constant 0 : index
    %55 = vector.load %arg7[%c0_26, %c0_27] : memref<4x256xf32, #tpu.memory_space<vmem>>, vector<4x256xf32>
    tpu.vector_store %arg7[%c0_26, %c0_27], %54 {strides = array<i32>} : memref<4x256xf32, #tpu.memory_space<vmem>>, vector<4x256xf32>,
    return
  }
}

</mosaic_0001>

<llo_original>
// kernel: pair_vae_forward.1
$region0: #{pair_vae_forward.1}
  #allocation0 [shape = 'u32[]', space=smem, size = 0x4, offset = 0x4, fixed_abs, tag = 'smem constant byte address 0x4 - core index']
  #allocation1 [shape = 'u32[144,128]{1,0:T(1,128)}', space=vmem, size = 0x12000, scoped, tag = 'internal scratch']
  %s0 = inlined_call_operand.vmem [shape: f32[4,96], index: 0, kind: input, shape index: {}]
  %s1 = inlined_call_operand.vmem [shape: f32[4,64], index: 1, kind: input, shape index: {}]
  %s2 = inlined_call_operand.vmem [shape: f32[96,64], index: 2, kind: input, shape index: {}]
  %s3 = inlined_call_operand.vmem [shape: f32[64,64], index: 3, kind: input, shape index: {}]
  %s4 = inlined_call_operand.vmem [shape: f32[32,64], index: 4, kind: input, shape index: {}]
  %s5 = inlined_call_operand.vmem [shape: f32[64,96], index: 5, kind: input, shape index: {}]
  %s6 = inlined_call_operand.vmem [shape: f32[1,288], index: 6, kind: input, shape index: {}]
  %s7 = inlined_call_operand.vmem [shape: f32[4,256], index: 7, kind: output, shape index: {}]
  %s8 = sld [smem:[#allocation0]]
  $region38: #{pair_vae_forward.1} parent=0
    _
  %s10 = ssub.s32 1, %s8
  %s11 = scalar_select 0, %s10, %s8
  // Predicated region
  $region2: #{pair_vae_forward.1} parent=0 // pred_check
    _
  $region3: #{pair_vae_forward.1} parent=0 // pred_check_branch
    %13 = sbr.rel (0) target = $region5
  $region4: #{pair_vae_forward.1} parent=0 // pred_region
    _
  $region5: #{pair_vae_forward.1} parent=0 // pred_fallthru
    _
  // Predicated region
  $region6: #{pair_vae_forward.1} parent=0 // pred_check
    _
  $region7: #{pair_vae_forward.1} parent=0 // pred_check_branch
    %15 = sbr.rel (0) target = $region9
  $region8: #{pair_vae_forward.1} parent=0 // pred_region
    _
  $region9: #{pair_vae_forward.1} parent=0 // pred_fallthru
    _
  // Predicated region
  $region10: #{pair_vae_forward.1} parent=0 // pred_check
    _
  $region11: #{pair_vae_forward.1} parent=0 // pred_check_branch
    %17 = sbr.rel (0) target = $region13
  $region12: #{pair_vae_forward.1} parent=0 // pred_region
    _
  $region13: #{pair_vae_forward.1} parent=0 // pred_fallthru
    _
  // Predicated region
  $region14: #{pair_vae_forward.1} parent=0 // pred_check
    _
  $region15: #{pair_vae_forward.1} parent=0 // pred_check_branch
    %19 = sbr.rel (0) target = $region17
  $region16: #{pair_vae_forward.1} parent=0 // pred_region
    _
  $region17: #{pair_vae_forward.1} parent=0 // pred_fallthru
    _
  // Predicated region
  $region18: #{pair_vae_forward.1} parent=0 // pred_check
    _
  $region19: #{pair_vae_forward.1} parent=0 // pred_check_branch
    %21 = sbr.rel (0) target = $region21
  $region20: #{pair_vae_forward.1} parent=0 // pred_region
    _
  $region21: #{pair_vae_forward.1} parent=0 // pred_fallthru
    _
  // Predicated region
  $region22: #{pair_vae_forward.1} parent=0 // pred_check
    _
  $region23: #{pair_vae_forward.1} parent=0 // pred_check_branch
    %23 = sbr.rel (0) target = $region25
  $region24: #{pair_vae_forward.1} parent=0 // pred_region
    _
  $region25: #{pair_vae_forward.1} parent=0 // pred_fallthru
    _
  // Predicated region
  $region26: #{pair_vae_forward.1} parent=0 // pred_check
    _
  $region27: #{pair_vae_forward.1} parent=0 // pred_check_branch
    %25 = sbr.rel (0) target = $region29
  $region28: #{pair_vae_forward.1} parent=0 // pred_region
    _
  $region29: #{pair_vae_forward.1} parent=0 // pred_fallthru
    _
  %v26 = vld [vmem:[%s6] sm:$0x1]
  %v27 = vld [vmem:[%s6 + $0x1] sm:$0x1]
  %v28 = vld [vmem:[%s6 + $0x1] sm:$0x3]
  %v29 = vld [vmem:[%s0] sm:$0xf]
  %v30 = vld [vmem:[%s2] sm:$0xff]
  %v31 = vld [vmem:[%s2 + $0x8] sm:$0xff]
  %v32 = vld [vmem:[%s2 + $0x10] sm:$0xff]
  %v33 = vld [vmem:[%s2 + $0x18] sm:$0xff]
  %v34 = vld [vmem:[%s2 + $0x20] sm:$0xff]
  %v35 = vld [vmem:[%s2 + $0x28] sm:$0xff]
  %v36 = vld [vmem:[%s2 + $0x30] sm:$0xff]
  %v37 = vld [vmem:[%s2 + $0x38] sm:$0xff]
  %v38 = vld [vmem:[%s2 + $0x40] sm:$0xff]
  %v39 = vld [vmem:[%s2 + $0x48] sm:$0xff]
  %v40 = vld [vmem:[%s2 + $0x50] sm:$0xff]
  %v41 = vld [vmem:[%s2 + $0x58] sm:$0xff]
  %v43 = vlaneseq
  %v44 = vshrl.u32 %v43, 7
  %v45 = vsub.s32 0, %v44
  %v46 = vrot.slane %v26, %v45
  %vm48 = vcmask 785408
  %v50 = vsel %vm48, %v29, 0
  %52 = vmatprep.subr.mxu0 0.0
  %53 = vmatpush1.msra.mxu0 0.0
  %54 = vmatprep.subr.mxu0 0.0
  %55 = vmatpush1.msra.mxu0 0.0
  %56 = vmatprep.subr.mxu0 0.0
  %57 = vmatpush1.msra.mxu0 0.0
  %58 = vmatprep.subr.mxu0 0.0
  %59 = vmatpush1.msra.mxu0 0.0
  %60 = vmatprep.subr.mxu0 0.0
  %v61 = vand.u32 %v41, 4294901760
  %62 = vmatpush1.msra.mxu0 %v61
  %63 = vmatprep.subr.mxu0 0.0
  %v64 = vand.u32 %v40, 4294901760
  %65 = vmatpush1.msra.mxu0 %v64
  %66 = vmatprep.subr.mxu0 0.0
  %v67 = vand.u32 %v39, 4294901760
  %68 = vmatpush1.msra.mxu0 %v67
  %69 = vmatprep.subr.mxu0 0.0
  %v70 = vand.u32 %v38, 4294901760
  %71 = vmatpush1.msra.mxu0 %v70
  %72 = vmatprep.subr.mxu0 0.0
  %v73 = vand.u32 %v37, 4294901760
  %74 = vmatpush1.msra.mxu0 %v73
  %75 = vmatprep.subr.mxu0 0.0
  %v76 = vand.u32 %v36, 4294901760
  %77 = vmatpush1.msra.mxu0 %v76
  %78 = vmatprep.subr.mxu0 0.0
  %v79 = vand.u32 %v35, 4294901760
  %80 = vmatpush1.msra.mxu0 %v79
  %81 = vmatprep.subr.mxu0 0.0
  %v82 = vand.u32 %v34, 4294901760
  %83 = vmatpush1.msra.mxu0 %v82
  %84 = vmatprep.subr.mxu0 0.0
  %v85 = vand.u32 %v33, 4294901760
  %86 = vmatpush1.msra.mxu0 %v85
  %87 = vmatprep.subr.mxu0 0.0
  %v88 = vand.u32 %v32, 4294901760
  %89 = vmatpush1.msra.mxu0 %v88
  %90 = vmatprep.subr.mxu0 0.0
  %v91 = vand.u32 %v31, 4294901760
  %92 = vmatpush1.msra.mxu0 %v91
  %93 = vmatprep.subr.mxu0 0.0
  %v94 = vand.u32 %v30, 4294901760
  %95 = vmatpush1.msra.mxu0 %v94
  %96 = vmatprep.subr.mxu0 0.0
  %97 = vmatpush2.msra.mxu0 0.0
  %98 = vmatprep.subr.mxu0 0.0
  %99 = vmatpush2.msra.mxu0 0.0
  %100 = vmatprep.subr.mxu0 0.0
  %101 = vmatpush2.msra.mxu0 0.0
  %102 = vmatprep.subr.mxu0 0.0
  %103 = vmatpush2.msra.mxu0 0.0
  %104 = vmatprep.subr.mxu0 0.0
  %105 = vmatpush2.msra.mxu0 0.0
  %106 = vmatprep.subr.mxu0 0.0
  %107 = vmatpush2.msra.mxu0 0.0
  %108 = vmatprep.subr.mxu0 0.0
  %109 = vmatpush2.msra.mxu0 0.0
  %110 = vmatprep.subr.mxu0 0.0
  %111 = vmatpush2.msra.mxu0 0.0
  %112 = vmatprep.subr.mxu0 0.0
  %113 = vmatpush2.msra.mxu0 0.0
  %114 = vmatprep.subr.mxu0 0.0
  %115 = vmatpush2.msra.mxu0 0.0
  %116 = vmatprep.subr.mxu0 0.0
  %117 = vmatpush2.msra.mxu0 0.0
  %118 = vmatprep.subr.mxu0 0.0
  %119 = vmatpush2.msra.mxu0 0.0
  %120 = vmatprep.subr.mxu0 0.0
  %121 = vmatpush2.msra.mxu0 0.0
  %122 = vmatprep.subr.mxu0 0.0
  %123 = vmatpush2.msra.mxu0 0.0
  %124 = vmatprep.subr.mxu0 0.0
  %125 = vmatpush2.msra.mxu0 0.0
  %126 = vmatprep.subr.mxu0 0.0
  %127 = vmatpush2.msra.mxu0 0.0
  %128 = vmatprep.mubr.f32.mxu0 0.0
  %v129 = vand.u32 %v50, 4294901760
  %v130 = vsub.f32 %v50, %v129
  %v131 = vand.u32 %v130, 4294901760
  %v132 = vsub.f32 %v130, %v131
  %v133 = vand.u32 %v132, 4294901760
  %134 = vmatmul.mubr.f32.gmra.mxu0 %v133
  %v135 = vpop.f32.mrf.mxu0
  %v136 = vadd.f32 %v46, %v135
  %v137 = vpop.f32.mrf.mxu0
  %138 = vdwg.mxu0
  %139 = vmatprep.subr.mxu0 0.0
  %140 = vmatpush1.msra.mxu0 0.0
  %141 = vmatprep.subr.mxu0 0.0
  %142 = vmatpush1.msra.mxu0 0.0
  %143 = vmatprep.subr.mxu0 0.0
  %144 = vmatpush1.msra.mxu0 0.0
  %145 = vmatprep.subr.mxu0 0.0
  %146 = vmatpush1.msra.mxu0 0.0
  %147 = vmatprep.subr.mxu0 0.0
  %v148 = vand.u32 %v41, 4294901760
  %v149 = vsub.f32 %v41, %v148
  %v150 = vand.u32 %v149, 4294901760
  %v151 = vsub.f32 %v149, %v150
  %v152 = vand.u32 %v151, 4294901760
  %153 = vmatpush1.msra.mxu0 %v152
  %154 = vmatprep.subr.mxu0 0.0
  %v155 = vand.u32 %v40, 4294901760
  %v156 = vsub.f32 %v40, %v155
  %v157 = vand.u32 %v156, 4294901760
  %v158 = vsub.f32 %v156, %v157
  %v159 = vand.u32 %v158, 4294901760
  %160 = vmatpush1.msra.mxu0 %v159
  %161 = vmatprep.subr.mxu0 0.0
  %v162 = vand.u32 %v39, 4294901760
  %v163 = vsub.f32 %v39, %v162
  %v164 = vand.u32 %v163, 4294901760
  %v165 = vsub.f32 %v163, %v164
  %v166 = vand.u32 %v165, 4294901760
  %167 = vmatpush1.msra.mxu0 %v166
  %168 = vmatprep.subr.mxu0 0.0
  %v169 = vand.u32 %v38, 4294901760
  %v170 = vsub.f32 %v38, %v169
  %v171 = vand.u32 %v170, 4294901760
  %v172 = vsub.f32 %v170, %v171
  %v173 = vand.u32 %v172, 4294901760
  %174 = vmatpush1.msra.mxu0 %v173
  %175 = vmatprep.subr.mxu0 0.0
  %v176 = vand.u32 %v37, 4294901760
  %v177 = vsub.f32 %v37, %v176
  %v178 = vand.u32 %v177, 4294901760
  %v179 = vsub.f32 %v177, %v178
  %v180 = vand.u32 %v179, 4294901760
  %181 = vmatpush1.msra.mxu0 %v180
  %182 = vmatprep.subr.mxu0 0.0
  %v183 = vand.u32 %v36, 4294901760
  %v184 = vsub.f32 %v36, %v183
  %v185 = vand.u32 %v184, 4294901760
  %v186 = vsub.f32 %v184, %v185
  %v187 = vand.u32 %v186, 4294901760
  %188 = vmatpush1.msra.mxu0 %v187
  %189 = vmatprep.subr.mxu0 0.0
  %v190 = vand.u32 %v35, 4294901760
  %v191 = vsub.f32 %v35, %v190
  %v192 = vand.u32 %v191, 4294901760
  %v193 = vsub.f32 %v191, %v192
  %v194 = vand.u32 %v193, 4294901760
  %195 = vmatpush1.msra.mxu0 %v194
  %196 = vmatprep.subr.mxu0 0.0
  %v197 = vand.u32 %v34, 4294901760
  %v198 = vsub.f32 %v34, %v197
  %v199 = vand.u32 %v198, 4294901760
  %v200 = vsub.f32 %v198, %v199
  %v201 = vand.u32 %v200, 4294901760
  %202 = vmatpush1.msra.mxu0 %v201
  %203 = vmatprep.subr.mxu0 0.0
  %v204 = vand.u32 %v33, 4294901760
  %v205 = vsub.f32 %v33, %v204
  %v206 = vand.u32 %v205, 4294901760
  %v207 = vsub.f32 %v205, %v206
  %v208 = vand.u32 %v207, 4294901760
  %209 = vmatpush1.msra.mxu0 %v208
  %210 = vmatprep.subr.mxu0 0.0
  %v211 = vand.u32 %v32, 4294901760
  %v212 = vsub.f32 %v32, %v211
  %v213 = vand.u32 %v212, 4294901760
  %v214 = vsub.f32 %v212, %v213
  %v215 = vand.u32 %v214, 4294901760
  %216 = vmatpush1.msra.mxu0 %v215
  %217 = vmatprep.subr.mxu0 0.0
  %v218 = vand.u32 %v31, 4294901760
  %v219 = vsub.f32 %v31, %v218
  %v220 = vand.u32 %v219, 4294901760
  %v221 = vsub.f32 %v219, %v220
  %v222 = vand.u32 %v221, 4294901760
  %223 = vmatpush1.msra.mxu0 %v222
  %224 = vmatprep.subr.mxu0 0.0
  %v225 = vand.u32 %v30, 4294901760
  %v226 = vsub.f32 %v30, %v225
  %v227 = vand.u32 %v226, 4294901760
  %v228 = vsub.f32 %v226, %v227
  %v229 = vand.u32 %v228, 4294901760
  %230 = vmatpush1.msra.mxu0 %v229
  %231 = vmatprep.subr.mxu0 0.0
  %232 = vmatpush2.msra.mxu0 0.0
  %233 = vmatprep.subr.mxu0 0.0
  %234 = vmatpush2.msra.mxu0 0.0
  %235 = vmatprep.subr.mxu0 0.0
  %236 = vmatpush2.msra.mxu0 0.0
  %237 = vmatprep.subr.mxu0 0.0
  %238 = vmatpush2.msra.mxu0 0.0
  %239 = vmatprep.subr.mxu0 0.0
  %240 = vmatpush2.msra.mxu0 0.0
  %241 = vmatprep.subr.mxu0 0.0
  %242 = vmatpush2.msra.mxu0 0.0
  %243 = vmatprep.subr.mxu0 0.0
  %244 = vmatpush2.msra.mxu0 0.0
  %245 = vmatprep.subr.mxu0 0.0
  %246 = vmatpush2.msra.mxu0 0.0
  %247 = vmatprep.subr.mxu0 0.0
  %248 = vmatpush2.msra.mxu0 0.0
  %249 = vmatprep.subr.mxu0 0.0
  %250 = vmatpush2.msra.mxu0 0.0
  %251 = vmatprep.subr.mxu0 0.0
  %252 = vmatpush2.msra.mxu0 0.0
  %253 = vmatprep.subr.mxu0 0.0
  %254 = vmatpush2.msra.mxu0 0.0
  %255 = vmatprep.subr.mxu0 0.0
  %256 = vmatpush2.msra.mxu0 0.0
  %257 = vmatprep.subr.mxu0 0.0
  %258 = vmatpush2.msra.mxu0 0.0
  %259 = vmatprep.subr.mxu0 0.0
  %260 = vmatpush2.msra.mxu0 0.0
  %261 = vmatprep.subr.mxu0 0.0
  %262 = vmatpush2.msra.mxu0 0.0
  %263 = vmatprep.mubr.f32.mxu0 0.0
  %v264 = vand.u32 %v50, 4294901760
  %265 = vmatmul.mubr.f32.gmra.mxu0 %v264
  %v266 = vpop.f32.mrf.mxu0
  %v267 = vadd.f32 %v136, %v266
  %v268 = vpop.f32.mrf.mxu0
  %269 = vdwg.mxu0
  %270 = vmatprep.subr.mxu0 0.0
  %271 = vmatpush1.msra.mxu0 0.0
  %272 = vmatprep.subr.mxu0 0.0
  %273 = vmatpush1.msra.mxu0 0.0
  %274 = vmatprep.subr.mxu0 0.0
  %275 = vmatpush1.msra.mxu0 0.0
  %276 = vmatprep.subr.mxu0 0.0
  %277 = vmatpush1.msra.mxu0 0.0
  %278 = vmatprep.subr.mxu0 0.0
  %v279 = vand.u32 %v41, 4294901760
  %v280 = vsub.f32 %v41, %v279
  %281 = vmatpush1.msra.mxu0 %v280
  %282 = vmatprep.subr.mxu0 0.0
  %v283 = vand.u32 %v40, 4294901760
  %v284 = vsub.f32 %v40, %v283
  %285 = vmatpush1.msra.mxu0 %v284
  %286 = vmatprep.subr.mxu0 0.0
  %v287 = vand.u32 %v39, 4294901760
  %v288 = vsub.f32 %v39, %v287
  %289 = vmatpush1.msra.mxu0 %v288
  %290 = vmatprep.subr.mxu0 0.0
  %v291 = vand.u32 %v38, 4294901760
  %v292 = vsub.f32 %v38, %v291
  %293 = vmatpush1.msra.mxu0 %v292
  %294 = vmatprep.subr.mxu0 0.0
  %v295 = vand.u32 %v37, 4294901760
  %v296 = vsub.f32 %v37, %v295
  %297 = vmatpush1.msra.mxu0 %v296
  %298 = vmatprep.subr.mxu0 0.0
  %v299 = vand.u32 %v36, 4294901760
  %v300 = vsub.f32 %v36, %v299
  %301 = vmatpush1.msra.mxu0 %v300
  %302 = vmatprep.subr.mxu0 0.0
  %v303 = vand.u32 %v35, 4294901760
  %v304 = vsub.f32 %v35, %v303
  %305 = vmatpush1.msra.mxu0 %v304
  %306 = vmatprep.subr.mxu0 0.0
  %v307 = vand.u32 %v34, 4294901760
  %v308 = vsub.f32 %v34, %v307
  %309 = vmatpush1.msra.mxu0 %v308
  %310 = vmatprep.subr.mxu0 0.0
  %v311 = vand.u32 %v33, 4294901760
  %v312 = vsub.f32 %v33, %v311
  %313 = vmatpush1.msra.mxu0 %v312
  %314 = vmatprep.subr.mxu0 0.0
  %v315 = vand.u32 %v32, 4294901760
  %v316 = vsub.f32 %v32, %v315
  %317 = vmatpush1.msra.mxu0 %v316
  %318 = vmatprep.subr.mxu0 0.0
  %v319 = vand.u32 %v31, 4294901760
  %v320 = vsub.f32 %v31, %v319
  %321 = vmatpush1.msra.mxu0 %v320
  %322 = vmatprep.subr.mxu0 0.0
  %v323 = vand.u32 %v30, 4294901760
  %v324 = vsub.f32 %v30, %v323
  %325 = vmatpush1.msra.mxu0 %v324
  %326 = vmatprep.subr.mxu0 0.0
  %327 = vmatpush2.msra.mxu0 0.0
  %328 = vmatprep.subr.mxu0 0.0
  %329 = vmatpush2.msra.mxu0 0.0
  %330 = vmatprep.subr.mxu0 0.0
  %331 = vmatpush2.msra.mxu0 0.0
  %332 = vmatprep.subr.mxu0 0.0
  %333 = vmatpush2.msra.mxu0 0.0
  %334 = vmatprep.subr.mxu0 0.0
  %335 = vmatpush2.msra.mxu0 0.0
  %336 = vmatprep.subr.mxu0 0.0
  %337 = vmatpush2.msra.mxu0 0.0
  %338 = vmatprep.subr.mxu0 0.0
  %339 = vmatpush2.msra.mxu0 0.0
  %340 = vmatprep.subr.mxu0 0.0
  %341 = vmatpush2.msra.mxu0 0.0
  %342 = vmatprep.subr.mxu0 0.0
  %343 = vmatpush2.msra.mxu0 0.0
  %344 = vmatprep.subr.mxu0 0.0
  %345 = vmatpush2.msra.mxu0 0.0
  %346 = vmatprep.subr.mxu0 0.0
  %347 = vmatpush2.msra.mxu0 0.0
  %348 = vmatprep.subr.mxu0 0.0
  %349 = vmatpush2.msra.mxu0 0.0
  %350 = vmatprep.subr.mxu0 0.0
  %351 = vmatpush2.msra.mxu0 0.0
  %352 = vmatprep.subr.mxu0 0.0
  %353 = vmatpush2.msra.mxu0 0.0
  %354 = vmatprep.subr.mxu0 0.0
  %355 = vmatpush2.msra.mxu0 0.0
  %356 = vmatprep.subr.mxu0 0.0
  %357 = vmatpush2.msra.mxu0 0.0
  %358 = vmatprep.mubr.f32.mxu0 0.0
  %v359 = vand.u32 %v50, 4294901760
  %v360 = vsub.f32 %v50, %v359
  %361 = vmatmul.mubr.f32.gmra.mxu0 %v360
  %v362 = vpop.f32.mrf.mxu0
  %v363 = vadd.f32 %v267, %v362
  %v364 = vpop.f32.mrf.mxu0
  %365 = vdwg.mxu0
  %366 = vmatprep.subr.mxu0 0.0
  %367 = vmatpush1.msra.mxu0 0.0
  %368 = vmatprep.subr.mxu0 0.0
  %369 = vmatpush1.msra.mxu0 0.0
  %370 = vmatprep.subr.mxu0 0.0
  %371 = vmatpush1.msra.mxu0 0.0
  %372 = vmatprep.subr.mxu0 0.0
  %373 = vmatpush1.msra.mxu0 0.0
  %374 = vmatprep.subr.mxu0 0.0
  %v375 = vand.u32 %v41, 4294901760
  %376 = vmatpush1.msra.mxu0 %v375
  %377 = vmatprep.subr.mxu0 0.0
  %v378 = vand.u32 %v40, 4294901760
  %379 = vmatpush1.msra.mxu0 %v378
  %380 = vmatprep.subr.mxu0 0.0
  %v381 = vand.u32 %v39, 4294901760
  %382 = vmatpush1.msra.mxu0 %v381
  %383 = vmatprep.subr.mxu0 0.0
  %v384 = vand.u32 %v38, 4294901760
  %385 = vmatpush1.msra.mxu0 %v384
  %386 = vmatprep.subr.mxu0 0.0
  %v387 = vand.u32 %v37, 4294901760
  %388 = vmatpush1.msra.mxu0 %v387
  %389 = vmatprep.subr.mxu0 0.0
  %v390 = vand.u32 %v36, 4294901760
  %391 = vmatpush1.msra.mxu0 %v390
  %392 = vmatprep.subr.mxu0 0.0
  %v393 = vand.u32 %v35, 4294901760
  %394 = vmatpush1.msra.mxu0 %v393
  %395 = vmatprep.subr.mxu0 0.0
  %v396 = vand.u32 %v34, 4294901760
  %397 = vmatpush1.msra.mxu0 %v396
  %398 = vmatprep.subr.mxu0 0.0
  %v399 = vand.u32 %v33, 4294901760
  %400 = vmatpush1.msra.mxu0 %v399
  %401 = vmatprep.subr.mxu0 0.0
  %v402 = vand.u32 %v32, 4294901760
  %403 = vmatpush1.msra.mxu0 %v402
  %404 = vmatprep.subr.mxu0 0.0
  %v405 = vand.u32 %v31, 4294901760
  %406 = vmatpush1.msra.mxu0 %v405
  %407 = vmatprep.subr.mxu0 0.0
  %v408 = vand.u32 %v30, 4294901760
  %409 = vmatpush1.msra.mxu0 %v408
  %410 = vmatprep.subr.mxu0 0.0
  %411 = vmatpush2.msra.mxu0 0.0
  %412 = vmatprep.subr.mxu0 0.0
  %413 = vmatpush2.msra.mxu0 0.0
  %414 = vmatprep.subr.mxu0 0.0
  %415 = vmatpush2.msra.mxu0 0.0
  %416 = vmatprep.subr.mxu0 0.0
  %417 = vmatpush2.msra.mxu0 0.0
  %418 = vmatprep.subr.mxu0 0.0
  %419 = vmatpush2.msra.mxu0 0.0
  %420 = vmatprep.subr.mxu0 0.0
  %421 = vmatpush2.msra.mxu0 0.0
  %422 = vmatprep.subr.mxu0 0.0
  %423 = vmatpush2.msra.mxu0 0.0
  %424 = vmatprep.subr.mxu0 0.0
  %425 = vmatpush2.msra.mxu0 0.0
  %426 = vmatprep.subr.mxu0 0.0
  %427 = vmatpush2.msra.mxu0 0.0
  %428 = vmatprep.subr.mxu0 0.0
  %429 = vmatpush2.msra.mxu0 0.0
  %430 = vmatprep.subr.mxu0 0.0
  %431 = vmatpush2.msra.mxu0 0.0
  %432 = vmatprep.subr.mxu0 0.0
  %433 = vmatpush2.msra.mxu0 0.0
  %434 = vmatprep.subr.mxu0 0.0
  %435 = vmatpush2.msra.mxu0 0.0
  %436 = vmatprep.subr.mxu0 0.0
  %437 = vmatpush2.msra.mxu0 0.0
  %438 = vmatprep.subr.mxu0 0.0
  %439 = vmatpush2.msra.mxu0 0.0
  %440 = vmatprep.subr.mxu0 0.0
  %441 = vmatpush2.msra.mxu0 0.0
  %442 = vmatprep.mubr.f32.mxu0 0.0
  %v443 = vand.u32 %v50, 4294901760
  %v444 = vsub.f32 %v50, %v443
  %v445 = vand.u32 %v444, 4294901760
  %446 = vmatmul.mubr.f32.gmra.mxu0 %v445
  %v447 = vpop.f32.mrf.mxu0
  %v448 = vadd.f32 %v363, %v447
  %v449 = vpop.f32.mrf.mxu0
  %450 = vdwg.mxu0
  %451 = vmatprep.subr.mxu0 0.0
  %452 = vmatpush1.msra.mxu0 0.0
  %453 = vmatprep.subr.mxu0 0.0
  %454 = vmatpush1.msra.mxu0 0.0
  %455 = vmatprep.subr.mxu0 0.0
  %456 = vmatpush1.msra.mxu0 0.0
  %457 = vmatprep.subr.mxu0 0.0
  %458 = vmatpush1.msra.mxu0 0.0
  %459 = vmatprep.subr.mxu0 0.0
  %v460 = vand.u32 %v41, 4294901760
  %v461 = vsub.f32 %v41, %v460
  %v462 = vand.u32 %v461, 4294901760
  %463 = vmatpush1.msra.mxu0 %v462
  %464 = vmatprep.subr.mxu0 0.0
  %v465 = vand.u32 %v40, 4294901760
  %v466 = vsub.f32 %v40, %v465
  %v467 = vand.u32 %v466, 4294901760
  %468 = vmatpush1.msra.mxu0 %v467
  %469 = vmatprep.subr.mxu0 0.0
  %v470 = vand.u32 %v39, 4294901760
  %v471 = vsub.f32 %v39, %v470
  %v472 = vand.u32 %v471, 4294901760
  %473 = vmatpush1.msra.mxu0 %v472
  %474 = vmatprep.subr.mxu0 0.0
  %v475 = vand.u32 %v38, 4294901760
  %v476 = vsub.f32 %v38, %v475
  %v477 = vand.u32 %v476, 4294901760
  %478 = vmatpush1.msra.mxu0 %v477
  %479 = vmatprep.subr.mxu0 0.0
  %v480 = vand.u32 %v37, 4294901760
  %v481 = vsub.f32 %v37, %v480
  %v482 = vand.u32 %v481, 4294901760
  %483 = vmatpush1.msra.mxu0 %v482
  %484 = vmatprep.subr.mxu0 0.0
  %v485 = vand.u32 %v36, 4294901760
  %v486 = vsub.f32 %v36, %v485
  %v487 = vand.u32 %v486, 4294901760
  %488 = vmatpush1.msra.mxu0 %v487
  %489 = vmatprep.subr.mxu0 0.0
  %v490 = vand.u32 %v35, 4294901760
  %v491 = vsub.f32 %v35, %v490
  %v492 = vand.u32 %v491, 4294901760
  %493 = vmatpush1.msra.mxu0 %v492
  %494 = vmatprep.subr.mxu0 0.0
  %v495 = vand.u32 %v34, 4294901760
  %v496 = vsub.f32 %v34, %v495
  %v497 = vand.u32 %v496, 4294901760
  %498 = vmatpush1.msra.mxu0 %v497
  %499 = vmatprep.subr.mxu0 0.0
  %v500 = vand.u32 %v33, 4294901760
  %v501 = vsub.f32 %v33, %v500
  %v502 = vand.u32 %v501, 4294901760
  %503 = vmatpush1.msra.mxu0 %v502
  %504 = vmatprep.subr.mxu0 0.0
  %v505 = vand.u32 %v32, 4294901760
  %v506 = vsub.f32 %v32, %v505
  %v507 = vand.u32 %v506, 4294901760
  %508 = vmatpush1.msra.mxu0 %v507
  %509 = vmatprep.subr.mxu0 0.0
  %v510 = vand.u32 %v31, 4294901760
  %v511 = vsub.f32 %v31, %v510
  %v512 = vand.u32 %v511, 4294901760
  %513 = vmatpush1.msra.mxu0 %v512
  %514 = vmatprep.subr.mxu0 0.0
  %v515 = vand.u32 %v30, 4294901760
  %v516 = vsub.f32 %v30, %v515
  %v517 = vand.u32 %v516, 4294901760
  %518 = vmatpush1.msra.mxu0 %v517
  %519 = vmatprep.subr.mxu0 0.0
  %520 = vmatpush2.msra.mxu0 0.0
  %521 = vmatprep.subr.mxu0 0.0
  %522 = vmatpush2.msra.mxu0 0.0
  %523 = vmatprep.subr.mxu0 0.0
  %524 = vmatpush2.msra.mxu0 0.0
  %525 = vmatprep.subr.mxu0 0.0
  %526 = vmatpush2.msra.mxu0 0.0
  %527 = vmatprep.subr.mxu0 0.0
  %528 = vmatpush2.msra.mxu0 0.0
  %529 = vmatprep.subr.mxu0 0.0
  %530 = vmatpush2.msra.mxu0 0.0
  %531 = vmatprep.subr.mxu0 0.0
  %532 = vmatpush2.msra.mxu0 0.0
  %533 = vmatprep.subr.mxu0 0.0
  %534 = vmatpush2.msra.mxu0 0.0
  %535 = vmatprep.subr.mxu0 0.0
  %536 = vmatpush2.msra.mxu0 0.0
  %537 = vmatprep.subr.mxu0 0.0
  %538 = vmatpush2.msra.mxu0 0.0
  %539 = vmatprep.subr.mxu0 0.0
  %540 = vmatpush2.msra.mxu0 0.0
  %541 = vmatprep.subr.mxu0 0.0
  %542 = vmatpush2.msra.mxu0 0.0
  %543 = vmatprep.subr.mxu0 0.0
  %544 = vmatpush2.msra.mxu0 0.0
  %545 = vmatprep.subr.mxu0 0.0
  %546 = vmatpush2.msra.mxu0 0.0
  %547 = vmatprep.subr.mxu0 0.0
  %548 = vmatpush2.msra.mxu0 0.0
  %549 = vmatprep.subr.mxu0 0.0
  %550 = vmatpush2.msra.mxu0 0.0
  %551 = vmatprep.mubr.f32.mxu0 0.0
  %v552 = vand.u32 %v50, 4294901760
  %553 = vmatmul.mubr.f32.gmra.mxu0 %v552
  %v554 = vpop.f32.mrf.mxu0
  %v555 = vadd.f32 %v448, %v554
  %v556 = vpop.f32.mrf.mxu0
  %557 = vdwg.mxu0
  %558 = vmatprep.subr.mxu0 0.0
  %559 = vmatpush1.msra.mxu0 0.0
  %560 = vmatprep.subr.mxu0 0.0
  %561 = vmatpush1.msra.mxu0 0.0
  %562 = vmatprep.subr.mxu0 0.0
  %563 = vmatpush1.msra.mxu0 0.0
  %564 = vmatprep.subr.mxu0 0.0
  %565 = vmatpush1.msra.mxu0 0.0
  %566 = vmatprep.subr.mxu0 0.0
  %v567 = vand.u32 %v41, 4294901760
  %568 = vmatpush1.msra.mxu0 %v567
  %569 = vmatprep.subr.mxu0 0.0
  %v570 = vand.u32 %v40, 4294901760
  %571 = vmatpush1.msra.mxu0 %v570
  %572 = vmatprep.subr.mxu0 0.0
  %v573 = vand.u32 %v39, 4294901760
  %574 = vmatpush1.msra.mxu0 %v573
  %575 = vmatprep.subr.mxu0 0.0
  %v576 = vand.u32 %v38, 4294901760
  %577 = vmatpush1.msra.mxu0 %v576
  %578 = vmatprep.subr.mxu0 0.0
  %v579 = vand.u32 %v37, 4294901760
  %580 = vmatpush1.msra.mxu0 %v579
  %581 = vmatprep.subr.mxu0 0.0
  %v582 = vand.u32 %v36, 4294901760
  %583 = vmatpush1.msra.mxu0 %v582
  %584 = vmatprep.subr.mxu0 0.0
  %v585 = vand.u32 %v35, 4294901760
  %586 = vmatpush1.msra.mxu0 %v585
  %587 = vmatprep.subr.mxu0 0.0
  %v588 = vand.u32 %v34, 4294901760
  %589 = vmatpush1.msra.mxu0 %v588
  %590 = vmatprep.subr.mxu0 0.0
  %v591 = vand.u32 %v33, 4294901760
  %592 = vmatpush1.msra.mxu0 %v591
  %593 = vmatprep.subr.mxu0 0.0
  %v594 = vand.u32 %v32, 4294901760
  %595 = vmatpush1.msra.mxu0 %v594
  %596 = vmatprep.subr.mxu0 0.0
  %v597 = vand.u32 %v31, 4294901760
  %598 = vmatpush1.msra.mxu0 %v597
  %599 = vmatprep.subr.mxu0 0.0
  %v600 = vand.u32 %v30, 4294901760
  %601 = vmatpush1.msra.mxu0 %v600
  %602 = vmatprep.subr.mxu0 0.0
  %603 = vmatpush2.msra.mxu0 0.0
  %604 = vmatprep.subr.mxu0 0.0
  %605 = vmatpush2.msra.mxu0 0.0
  %606 = vmatprep.subr.mxu0 0.0
  %607 = vmatpush2.msra.mxu0 0.0
  %608 = vmatprep.subr.mxu0 0.0
  %609 = vmatpush2.msra.mxu0 0.0
  %610 = vmatprep.subr.mxu0 0.0
  %611 = vmatpush2.msra.mxu0 0.0
  %612 = vmatprep.subr.mxu0 0.0
  %613 = vmatpush2.msra.mxu0 0.0
  %614 = vmatprep.subr.mxu0 0.0
  %615 = vmatpush2.msra.mxu0 0.0
  %616 = vmatprep.subr.mxu0 0.0
  %617 = vmatpush2.msra.mxu0 0.0
  %618 = vmatprep.subr.mxu0 0.0
  %619 = vmatpush2.msra.mxu0 0.0
  %620 = vmatprep.subr.mxu0 0.0
  %621 = vmatpush2.msra.mxu0 0.0
  %622 = vmatprep.subr.mxu0 0.0
  %623 = vmatpush2.msra.mxu0 0.0
  %624 = vmatprep.subr.mxu0 0.0
  %625 = vmatpush2.msra.mxu0 0.0
  %626 = vmatprep.subr.mxu0 0.0
  %627 = vmatpush2.msra.mxu0 0.0
  %628 = vmatprep.subr.mxu0 0.0
  %629 = vmatpush2.msra.mxu0 0.0
  %630 = vmatprep.subr.mxu0 0.0
  %631 = vmatpush2.msra.mxu0 0.0
  %632 = vmatprep.subr.mxu0 0.0
  %633 = vmatpush2.msra.mxu0 0.0
  %634 = vmatprep.mubr.f32.mxu0 0.0
  %v635 = vand.u32 %v50, 4294901760
  %636 = vmatmul.mubr.f32.gmra.mxu0 %v635
  %v637 = vpop.f32.mrf.mxu0
  %v638 = vadd.f32 %v555, %v637
  %v639 = vpop.f32.mrf.mxu0
  %640 = vdwg.mxu0
  %v641 = vmax.f32 %v638, 0.0
  %v642 = vld [vmem:[%s3] sm:$0xff]
  %v643 = vld [vmem:[%s3 + $0x8] sm:$0xff]
  %v644 = vld [vmem:[%s3 + $0x10] sm:$0xff]
  %v645 = vld [vmem:[%s3 + $0x18] sm:$0xff]
  %v646 = vld [vmem:[%s3 + $0x20] sm:$0xff]
  %v647 = vld [vmem:[%s3 + $0x28] sm:$0xff]
  %v648 = vld [vmem:[%s3 + $0x30] sm:$0xff]
  %v649 = vld [vmem:[%s3 + $0x38] sm:$0xff]
  %650 = vrot.lane.b32.xlu0 %v46, 64
  %v651 = vpop.permute.xlu0 %650
  %vm653 = vcmask 523264
  %v655 = vsel %vm653, %v641, 0
  %657 = vmatprep.subr.mxu0 0.0
  %658 = vmatpush1.msra.mxu0 0.0
  %659 = vmatprep.subr.mxu0 0.0
  %660 = vmatpush1.msra.mxu0 0.0
  %661 = vmatprep.subr.mxu0 0.0
  %662 = vmatpush1.msra.mxu0 0.0
  %663 = vmatprep.subr.mxu0 0.0
  %664 = vmatpush1.msra.mxu0 0.0
  %665 = vmatprep.subr.mxu0 0.0
  %666 = vmatpush1.msra.mxu0 0.0
  %667 = vmatprep.subr.mxu0 0.0
  %668 = vmatpush1.msra.mxu0 0.0
  %669 = vmatprep.subr.mxu0 0.0
  %670 = vmatpush1.msra.mxu0 0.0
  %671 = vmatprep.subr.mxu0 0.0
  %672 = vmatpush1.msra.mxu0 0.0
  %673 = vmatprep.subr.mxu0 0.0
  %v674 = vand.u32 %v649, 4294901760
  %675 = vmatpush1.msra.mxu0 %v674
  %676 = vmatprep.subr.mxu0 0.0
  %v677 = vand.u32 %v648, 4294901760
  %678 = vmatpush1.msra.mxu0 %v677
  %679 = vmatprep.subr.mxu0 0.0
  %v680 = vand.u32 %v647, 4294901760
  %681 = vmatpush1.msra.mxu0 %v680
  %682 = vmatprep.subr.mxu0 0.0
  %v683 = vand.u32 %v646, 4294901760
  %684 = vmatpush1.msra.mxu0 %v683
  %685 = vmatprep.subr.mxu0 0.0
  %v686 = vand.u32 %v645, 4294901760
  %687 = vmatpush1.msra.mxu0 %v686
  %688 = vmatprep.subr.mxu0 0.0
  %v689 = vand.u32 %v644, 4294901760
  %690 = vmatpush1.msra.mxu0 %v689
  %691 = vmatprep.subr.mxu0 0.0
  %v692 = vand.u32 %v643, 4294901760
  %693 = vmatpush1.msra.mxu0 %v692
  %694 = vmatprep.subr.mxu0 0.0
  %v695 = vand.u32 %v642, 4294901760
  %696 = vmatpush1.msra.mxu0 %v695
  %697 = vmatprep.subr.mxu0 0.0
  %698 = vmatpush2.msra.mxu0 0.0
  %699 = vmatprep.subr.mxu0 0.0
  %700 = vmatpush2.msra.mxu0 0.0
  %701 = vmatprep.subr.mxu0 0.0
  %702 = vmatpush2.msra.mxu0 0.0
  %703 = vmatprep.subr.mxu0 0.0
  %704 = vmatpush2.msra.mxu0 0.0
  %705 = vmatprep.subr.mxu0 0.0
  %706 = vmatpush2.msra.mxu0 0.0
  %707 = vmatprep.subr.mxu0 0.0
  %708 = vmatpush2.msra.mxu0 0.0
  %709 = vmatprep.subr.mxu0 0.0
  %710 = vmatpush2.msra.mxu0 0.0
  %711 = vmatprep.subr.mxu0 0.0
  %712 = vmatpush2.msra.mxu0 0.0
  %713 = vmatprep.subr.mxu0 0.0
  %714 = vmatpush2.msra.mxu0 0.0
  %715 = vmatprep.subr.mxu0 0.0
  %716 = vmatpush2.msra.mxu0 0.0
  %717 = vmatprep.subr.mxu0 0.0
  %718 = vmatpush2.msra.mxu0 0.0
  %719 = vmatprep.subr.mxu0 0.0
  %720 = vmatpush2.msra.mxu0 0.0
  %721 = vmatprep.subr.mxu0 0.0
  %722 = vmatpush2.msra.mxu0 0.0
  %723 = vmatprep.subr.mxu0 0.0
  %724 = vmatpush2.msra.mxu0 0.0
  %725 = vmatprep.subr.mxu0 0.0
  %726 = vmatpush2.msra.mxu0 0.0
  %727 = vmatprep.subr.mxu0 0.0
  %728 = vmatpush2.msra.mxu0 0.0
  %729 = vmatprep.mubr.f32.mxu0 0.0
  %v730 = vand.u32 %v655, 4294901760
  %v731 = vsub.f32 %v655, %v730
  %v732 = vand.u32 %v731, 4294901760
  %v733 = vsub.f32 %v731, %v732
  %v734 = vand.u32 %v733, 4294901760
  %735 = vmatmul.mubr.f32.gmra.mxu0 %v734
  %v736 = vpop.f32.mrf.mxu0
  %v737 = vadd.f32 %v651, %v736
  %v738 = vpop.f32.mrf.mxu0
  %739 = vdwg.mxu0
  %740 = vmatprep.subr.mxu0 0.0
  %741 = vmatpush1.msra.mxu0 0.0
  %742 = vmatprep.subr.mxu0 0.0
  %743 = vmatpush1.msra.mxu0 0.0
  %744 = vmatprep.subr.mxu0 0.0
  %745 = vmatpush1.msra.mxu0 0.0
  %746 = vmatprep.subr.mxu0 0.0
  %747 = vmatpush1.msra.mxu0 0.0
  %748 = vmatprep.subr.mxu0 0.0
  %749 = vmatpush1.msra.mxu0 0.0
  %750 = vmatprep.subr.mxu0 0.0
  %751 = vmatpush1.msra.mxu0 0.0
  %752 = vmatprep.subr.mxu0 0.0
  %753 = vmatpush1.msra.mxu0 0.0
  %754 = vmatprep.subr.mxu0 0.0
  %755 = vmatpush1.msra.mxu0 0.0
  %756 = vmatprep.subr.mxu0 0.0
  %v757 = vand.u32 %v649, 4294901760
  %v758 = vsub.f32 %v649, %v757
  %v759 = vand.u32 %v758, 4294901760
  %v760 = vsub.f32 %v758, %v759
  %v761 = vand.u32 %v760, 4294901760
  %762 = vmatpush1.msra.mxu0 %v761
  %763 = vmatprep.subr.mxu0 0.0
  %v764 = vand.u32 %v648, 4294901760
  %v765 = vsub.f32 %v648, %v764
  %v766 = vand.u32 %v765, 4294901760
  %v767 = vsub.f32 %v765, %v766
  %v768 = vand.u32 %v767, 4294901760
  %769 = vmatpush1.msra.mxu0 %v768
  %770 = vmatprep.subr.mxu0 0.0
  %v771 = vand.u32 %v647, 4294901760
  %v772 = vsub.f32 %v647, %v771
  %v773 = vand.u32 %v772, 4294901760
  %v774 = vsub.f32 %v772, %v773
  %v775 = vand.u32 %v774, 4294901760
  %776 = vmatpush1.msra.mxu0 %v775
  %777 = vmatprep.subr.mxu0 0.0
  %v778 = vand.u32 %v646, 4294901760
  %v779 = vsub.f32 %v646, %v778
  %v780 = vand.u32 %v779, 4294901760
  %v781 = vsub.f32 %v779, %v780
  %v782 = vand.u32 %v781, 4294901760
  %783 = vmatpush1.msra.mxu0 %v782
  %784 = vmatprep.subr.mxu0 0.0
  %v785 = vand.u32 %v645, 4294901760
  %v786 = vsub.f32 %v645, %v785
  %v787 = vand.u32 %v786, 4294901760
  %v788 = vsub.f32 %v786, %v787
  %v789 = vand.u32 %v788, 4294901760
  %790 = vmatpush1.msra.mxu0 %v789
  %791 = vmatprep.subr.mxu0 0.0
  %v792 = vand.u32 %v644, 4294901760
  %v793 = vsub.f32 %v644, %v792
  %v794 = vand.u32 %v793, 4294901760
  %v795 = vsub.f32 %v793, %v794
  %v796 = vand.u32 %v795, 4294901760
  %797 = vmatpush1.msra.mxu0 %v796
  %798 = vmatprep.subr.mxu0 0.0
  %v799 = vand.u32 %v643, 4294901760
  %v800 = vsub.f32 %v643, %v799
  %v801 = vand.u32 %v800, 4294901760
  %v802 = vsub.f32 %v800, %v801
  %v803 = vand.u32 %v802, 4294901760
  %804 = vmatpush1.msra.mxu0 %v803
  %805 = vmatprep.subr.mxu0 0.0
  %v806 = vand.u32 %v642, 4294901760
  %v807 = vsub.f32 %v642, %v806
  %v808 = vand.u32 %v807, 4294901760
  %v809 = vsub.f32 %v807, %v808
  %v810 = vand.u32 %v809, 4294901760
  %811 = vmatpush1.msra.mxu0 %v810
  %812 = vmatprep.subr.mxu0 0.0
  %813 = vmatpush2.msra.mxu0 0.0
  %814 = vmatprep.subr.mxu0 0.0
  %815 = vmatpush2.msra.mxu0 0.0
  %816 = vmatprep.subr.mxu0 0.0
  %817 = vmatpush2.msra.mxu0 0.0
  %818 = vmatprep.subr.mxu0 0.0
  %819 = vmatpush2.msra.mxu0 0.0
  %820 = vmatprep.subr.mxu0 0.0
  %821 = vmatpush2.msra.mxu0 0.0
  %822 = vmatprep.subr.mxu0 0.0
  %823 = vmatpush2.msra.mxu0 0.0
  %824 = vmatprep.subr.mxu0 0.0
  %825 = vmatpush2.msra.mxu0 0.0
  %826 = vmatprep.subr.mxu0 0.0
  %827 = vmatpush2.msra.mxu0 0.0
  %828 = vmatprep.subr.mxu0 0.0
  %829 = vmatpush2.msra.mxu0 0.0
  %830 = vmatprep.subr.mxu0 0.0
  %831 = vmatpush2.msra.mxu0 0.0
  %832 = vmatprep.subr.mxu0 0.0
  %833 = vmatpush2.msra.mxu0 0.0
  %834 = vmatprep.subr.mxu0 0.0
  %835 = vmatpush2.msra.mxu0 0.0
  %836 = vmatprep.subr.mxu0 0.0
  %837 = vmatpush2.msra.mxu0 0.0
  %838 = vmatprep.subr.mxu0 0.0
  %839 = vmatpush2.msra.mxu0 0.0
  %840 = vmatprep.subr.mxu0 0.0
  %841 = vmatpush2.msra.mxu0 0.0
  %842 = vmatprep.subr.mxu0 0.0
  %843 = vmatpush2.msra.mxu0 0.0
  %844 = vmatprep.mubr.f32.mxu0 0.0
  %v845 = vand.u32 %v655, 4294901760
  %846 = vmatmul.mubr.f32.gmra.mxu0 %v845
  %v847 = vpop.f32.mrf.mxu0
  %v848 = vadd.f32 %v737, %v847
  %v849 = vpop.f32.mrf.mxu0
  %850 = vdwg.mxu0
  %851 = vmatprep.subr.mxu0 0.0
  %852 = vmatpush1.msra.mxu0 0.0
  %853 = vmatprep.subr.mxu0 0.0
  %854 = vmatpush1.msra.mxu0 0.0
  %855 = vmatprep.subr.mxu0 0.0
  %856 = vmatpush1.msra.mxu0 0.0
  %857 = vmatprep.subr.mxu0 0.0
  %858 = vmatpush1.msra.mxu0 0.0
  %859 = vmatprep.subr.mxu0 0.0
  %860 = vmatpush1.msra.mxu0 0.0
  %861 = vmatprep.subr.mxu0 0.0
  %862 = vmatpush1.msra.mxu0 0.0
  %863 = vmatprep.subr.mxu0 0.0
  %864 = vmatpush1.msra.mxu0 0.0
  %865 = vmatprep.subr.mxu0 0.0
  %866 = vmatpush1.msra.mxu0 0.0
  %867 = vmatprep.subr.mxu0 0.0
  %v868 = vand.u32 %v649, 4294901760
  %v869 = vsub.f32 %v649, %v868
  %870 = vmatpush1.msra.mxu0 %v869
  %871 = vmatprep.subr.mxu0 0.0
  %v872 = vand.u32 %v648, 4294901760
  %v873 = vsub.f32 %v648, %v872
  %874 = vmatpush1.msra.mxu0 %v873
  %875 = vmatprep.subr.mxu0 0.0
  %v876 = vand.u32 %v647, 4294901760
  %v877 = vsub.f32 %v647, %v876
  %878 = vmatpush1.msra.mxu0 %v877
  %879 = vmatprep.subr.mxu0 0.0
  %v880 = vand.u32 %v646, 4294901760
  %v881 = vsub.f32 %v646, %v880
  %882 = vmatpush1.msra.mxu0 %v881
  %883 = vmatprep.subr.mxu0 0.0
  %v884 = vand.u32 %v645, 4294901760
  %v885 = vsub.f32 %v645, %v884
  %886 = vmatpush1.msra.mxu0 %v885
  %887 = vmatprep.subr.mxu0 0.0
  %v888 = vand.u32 %v644, 4294901760
  %v889 = vsub.f32 %v644, %v888
  %890 = vmatpush1.msra.mxu0 %v889
  %891 = vmatprep.subr.mxu0 0.0
  %v892 = vand.u32 %v643, 4294901760
  %v893 = vsub.f32 %v643, %v892
  %894 = vmatpush1.msra.mxu0 %v893
  %895 = vmatprep.subr.mxu0 0.0
  %v896 = vand.u32 %v642, 4294901760
  %v897 = vsub.f32 %v642, %v896
  %898 = vmatpush1.msra.mxu0 %v897
  %899 = vmatprep.subr.mxu0 0.0
  %900 = vmatpush2.msra.mxu0 0.0
  %901 = vmatprep.subr.mxu0 0.0
  %902 = vmatpush2.msra.mxu0 0.0
  %903 = vmatprep.subr.mxu0 0.0
  %904 = vmatpush2.msra.mxu0 0.0
  %905 = vmatprep.subr.mxu0 0.0
  %906 = vmatpush2.msra.mxu0 0.0
  %907 = vmatprep.subr.mxu0 0.0
  %908 = vmatpush2.msra.mxu0 0.0
  %909 = vmatprep.subr.mxu0 0.0
  %910 = vmatpush2.msra.mxu0 0.0
  %911 = vmatprep.subr.mxu0 0.0
  %912 = vmatpush2.msra.mxu0 0.0
  %913 = vmatprep.subr.mxu0 0.0
  %914 = vmatpush2.msra.mxu0 0.0
  %915 = vmatprep.subr.mxu0 0.0
  %916 = vmatpush2.msra.mxu0 0.0
  %917 = vmatprep.subr.mxu0 0.0
  %918 = vmatpush2.msra.mxu0 0.0
  %919 = vmatprep.subr.mxu0 0.0
  %920 = vmatpush2.msra.mxu0 0.0
  %921 = vmatprep.subr.mxu0 0.0
  %922 = vmatpush2.msra.mxu0 0.0
  %923 = vmatprep.subr.mxu0 0.0
  %924 = vmatpush2.msra.mxu0 0.0
  %925 = vmatprep.subr.mxu0 0.0
  %926 = vmatpush2.msra.mxu0 0.0
  %927 = vmatprep.subr.mxu0 0.0
  %928 = vmatpush2.msra.mxu0 0.0
  %929 = vmatprep.subr.mxu0 0.0
  %930 = vmatpush2.msra.mxu0 0.0
  %931 = vmatprep.mubr.f32.mxu0 0.0
  %v932 = vand.u32 %v655, 4294901760
  %v933 = vsub.f32 %v655, %v932
  %934 = vmatmul.mubr.f32.gmra.mxu0 %v933
  %v935 = vpop.f32.mrf.mxu0
  %v936 = vadd.f32 %v848, %v935
  %v937 = vpop.f32.mrf.mxu0
  %938 = vdwg.mxu0
  %939 = vmatprep.subr.mxu0 0.0
  %940 = vmatpush1.msra.mxu0 0.0
  %941 = vmatprep.subr.mxu0 0.0
  %942 = vmatpush1.msra.mxu0 0.0
  %943 = vmatprep.subr.mxu0 0.0
  %944 = vmatpush1.msra.mxu0 0.0
  %945 = vmatprep.subr.mxu0 0.0
  %946 = vmatpush1.msra.mxu0 0.0
  %947 = vmatprep.subr.mxu0 0.0
  %948 = vmatpush1.msra.mxu0 0.0
  %949 = vmatprep.subr.mxu0 0.0
  %950 = vmatpush1.msra.mxu0 0.0
  %951 = vmatprep.subr.mxu0 0.0
  %952 = vmatpush1.msra.mxu0 0.0
  %953 = vmatprep.subr.mxu0 0.0
  %954 = vmatpush1.msra.mxu0 0.0
  %955 = vmatprep.subr.mxu0 0.0
  %v956 = vand.u32 %v649, 4294901760
  %957 = vmatpush1.msra.mxu0 %v956
  %958 = vmatprep.subr.mxu0 0.0
  %v959 = vand.u32 %v648, 4294901760
  %960 = vmatpush1.msra.mxu0 %v959
  %961 = vmatprep.subr.mxu0 0.0
  %v962 = vand.u32 %v647, 4294901760
  %963 = vmatpush1.msra.mxu0 %v962
  %964 = vmatprep.subr.mxu0 0.0
  %v965 = vand.u32 %v646, 4294901760
  %966 = vmatpush1.msra.mxu0 %v965
  %967 = vmatprep.subr.mxu0 0.0
  %v968 = vand.u32 %v645, 4294901760
  %969 = vmatpush1.msra.mxu0 %v968
  %970 = vmatprep.subr.mxu0 0.0
  %v971 = vand.u32 %v644, 4294901760
  %972 = vmatpush1.msra.mxu0 %v971
  %973 = vmatprep.subr.mxu0 0.0
  %v974 = vand.u32 %v643, 4294901760
  %975 = vmatpush1.msra.mxu0 %v974
  %976 = vmatprep.subr.mxu0 0.0
  %v977 = vand.u32 %v642, 4294901760
  %978 = vmatpush1.msra.mxu0 %v977
  %979 = vmatprep.subr.mxu0 0.0
  %980 = vmatpush2.msra.mxu0 0.0
  %981 = vmatprep.subr.mxu0 0.0
  %982 = vmatpush2.msra.mxu0 0.0
  %983 = vmatprep.subr.mxu0 0.0
  %984 = vmatpush2.msra.mxu0 0.0
  %985 = vmatprep.subr.mxu0 0.0
  %986 = vmatpush2.msra.mxu0 0.0
  %987 = vmatprep.subr.mxu0 0.0
  %988 = vmatpush2.msra.mxu0 0.0
  %989 = vmatprep.subr.mxu0 0.0
  %990 = vmatpush2.msra.mxu0 0.0
  %991 = vmatprep.subr.mxu0 0.0
  %992 = vmatpush2.msra.mxu0 0.0
  %993 = vmatprep.subr.mxu0 0.0
  %994 = vmatpush2.msra.mxu0 0.0
  %995 = vmatprep.subr.mxu0 0.0
  %996 = vmatpush2.msra.mxu0 0.0
  %997 = vmatprep.subr.mxu0 0.0
  %998 = vmatpush2.msra.mxu0 0.0
  %999 = vmatprep.subr.mxu0 0.0
  %1000 = vmatpush2.msra.mxu0 0.0
  %1001 = vmatprep.subr.mxu0 0.0
  %1002 = vmatpush2.msra.mxu0 0.0
  %1003 = vmatprep.subr.mxu0 0.0
  %1004 = vmatpush2.msra.mxu0 0.0
  %1005 = vmatprep.subr.mxu0 0.0
  %1006 = vmatpush2.msra.mxu0 0.0
  %1007 = vmatprep.subr.mxu0 0.0
  %1008 = vmatpush2.msra.mxu0 0.0
  %1009 = vmatprep.subr.mxu0 0.0
  %1010 = vmatpush2.msra.mxu0 0.0
  %1011 = vmatprep.mubr.f32.mxu0 0.0
  %v1012 = vand.u32 %v655, 4294901760
  %v1013 = vsub.f32 %v655, %v1012
  %v1014 = vand.u32 %v1013, 4294901760
  %1015 = vmatmul.mubr.f32.gmra.mxu0 %v1014
  %v1016 = vpop.f32.mrf.mxu0
  %v1017 = vadd.f32 %v936, %v1016
  %v1018 = vpop.f32.mrf.mxu0
  %1019 = vdwg.mxu0
  %1020 = vmatprep.subr.mxu0 0.0
  %1021 = vmatpush1.msra.mxu0 0.0
  %1022 = vmatprep.subr.mxu0 0.0
  %1023 = vmatpush1.msra.mxu0 0.0
  %1024 = vmatprep.subr.mxu0 0.0
  %1025 = vmatpush1.msra.mxu0 0.0
  %1026 = vmatprep.subr.mxu0 0.0
  %1027 = vmatpush1.msra.mxu0 0.0
  %1028 = vmatprep.subr.mxu0 0.0
  %1029 = vmatpush1.msra.mxu0 0.0
  %1030 = vmatprep.subr.mxu0 0.0
  %1031 = vmatpush1.msra.mxu0 0.0
  %1032 = vmatprep.subr.mxu0 0.0
  %1033 = vmatpush1.msra.mxu0 0.0
  %1034 = vmatprep.subr.mxu0 0.0
  %1035 = vmatpush1.msra.mxu0 0.0
  %1036 = vmatprep.subr.mxu0 0.0
  %v1037 = vand.u32 %v649, 4294901760
  %v1038 = vsub.f32 %v649, %v1037
  %v1039 = vand.u32 %v1038, 4294901760
  %1040 = vmatpush1.msra.mxu0 %v1039
  %1041 = vmatprep.subr.mxu0 0.0
  %v1042 = vand.u32 %v648, 4294901760
  %v1043 = vsub.f32 %v648, %v1042
  %v1044 = vand.u32 %v1043, 4294901760
  %1045 = vmatpush1.msra.mxu0 %v1044
  %1046 = vmatprep.subr.mxu0 0.0
  %v1047 = vand.u32 %v647, 4294901760
  %v1048 = vsub.f32 %v647, %v1047
  %v1049 = vand.u32 %v1048, 4294901760
  %1050 = vmatpush1.msra.mxu0 %v1049
  %1051 = vmatprep.subr.mxu0 0.0
  %v1052 = vand.u32 %v646, 4294901760
  %v1053 = vsub.f32 %v646, %v1052
  %v1054 = vand.u32 %v1053, 4294901760
  %1055 = vmatpush1.msra.mxu0 %v1054
  %1056 = vmatprep.subr.mxu0 0.0
  %v1057 = vand.u32 %v645, 4294901760
  %v1058 = vsub.f32 %v645, %v1057
  %v1059 = vand.u32 %v1058, 4294901760
  %1060 = vmatpush1.msra.mxu0 %v1059
  %1061 = vmatprep.subr.mxu0 0.0
  %v1062 = vand.u32 %v644, 4294901760
  %v1063 = vsub.f32 %v644, %v1062
  %v1064 = vand.u32 %v1063, 4294901760
  %1065 = vmatpush1.msra.mxu0 %v1064
  %1066 = vmatprep.subr.mxu0 0.0
  %v1067 = vand.u32 %v643, 4294901760
  %v1068 = vsub.f32 %v643, %v1067
  %v1069 = vand.u32 %v1068, 4294901760
  %1070 = vmatpush1.msra.mxu0 %v1069
  %1071 = vmatprep.subr.mxu0 0.0
  %v1072 = vand.u32 %v642, 4294901760
  %v1073 = vsub.f32 %v642, %v1072
  %v1074 = vand.u32 %v1073, 4294901760
  %1075 = vmatpush1.msra.mxu0 %v1074
  %1076 = vmatprep.subr.mxu0 0.0
  %1077 = vmatpush2.msra.mxu0 0.0
  %1078 = vmatprep.subr.mxu0 0.0
  %1079 = vmatpush2.msra.mxu0 0.0
  %1080 = vmatprep.subr.mxu0 0.0
  %1081 = vmatpush2.msra.mxu0 0.0
  %1082 = vmatprep.subr.mxu0 0.0
  %1083 = vmatpush2.msra.mxu0 0.0
  %1084 = vmatprep.subr.mxu0 0.0
  %1085 = vmatpush2.msra.mxu0 0.0
  %1086 = vmatprep.subr.mxu0 0.0
  %1087 = vmatpush2.msra.mxu0 0.0
  %1088 = vmatprep.subr.mxu0 0.0
  %1089 = vmatpush2.msra.mxu0 0.0
  %1090 = vmatprep.subr.mxu0 0.0
  %1091 = vmatpush2.msra.mxu0 0.0
  %1092 = vmatprep.subr.mxu0 0.0
  %1093 = vmatpush2.msra.mxu0 0.0
  %1094 = vmatprep.subr.mxu0 0.0
  %1095 = vmatpush2.msra.mxu0 0.0
  %1096 = vmatprep.subr.mxu0 0.0
  %1097 = vmatpush2.msra.mxu0 0.0
  %1098 = vmatprep.subr.mxu0 0.0
  %1099 = vmatpush2.msra.mxu0 0.0
  %1100 = vmatprep.subr.mxu0 0.0
  %1101 = vmatpush2.msra.mxu0 0.0
  %1102 = vmatprep.subr.mxu0 0.0
  %1103 = vmatpush2.msra.mxu0 0.0
  %1104 = vmatprep.subr.mxu0 0.0
  %1105 = vmatpush2.msra.mxu0 0.0
  %1106 = vmatprep.subr.mxu0 0.0
  %1107 = vmatpush2.msra.mxu0 0.0
  %1108 = vmatprep.mubr.f32.mxu0 0.0
  %v1109 = vand.u32 %v655, 4294901760
  %1110 = vmatmul.mubr.f32.gmra.mxu0 %v1109
  %v1111 = vpop.f32.mrf.mxu0
  %v1112 = vadd.f32 %v1017, %v1111
  %v1113 = vpop.f32.mrf.mxu0
  %1114 = vdwg.mxu0
  %1115 = vmatprep.subr.mxu0 0.0
  %1116 = vmatpush1.msra.mxu0 0.0
  %1117 = vmatprep.subr.mxu0 0.0
  %1118 = vmatpush1.msra.mxu0 0.0
  %1119 = vmatprep.subr.mxu0 0.0
  %1120 = vmatpush1.msra.mxu0 0.0
  %1121 = vmatprep.subr.mxu0 0.0
  %1122 = vmatpush1.msra.mxu0 0.0
  %1123 = vmatprep.subr.mxu0 0.0
  %1124 = vmatpush1.msra.mxu0 0.0
  %1125 = vmatprep.subr.mxu0 0.0
  %1126 = vmatpush1.msra.mxu0 0.0
  %1127 = vmatprep.subr.mxu0 0.0
  %1128 = vmatpush1.msra.mxu0 0.0
  %1129 = vmatprep.subr.mxu0 0.0
  %1130 = vmatpush1.msra.mxu0 0.0
  %1131 = vmatprep.subr.mxu0 0.0
  %v1132 = vand.u32 %v649, 4294901760
  %1133 = vmatpush1.msra.mxu0 %v1132
  %1134 = vmatprep.subr.mxu0 0.0
  %v1135 = vand.u32 %v648, 4294901760
  %1136 = vmatpush1.msra.mxu0 %v1135
  %1137 = vmatprep.subr.mxu0 0.0
  %v1138 = vand.u32 %v647, 4294901760
  %1139 = vmatpush1.msra.mxu0 %v1138
  %1140 = vmatprep.subr.mxu0 0.0
  %v1141 = vand.u32 %v646, 4294901760
  %1142 = vmatpush1.msra.mxu0 %v1141
  %1143 = vmatprep.subr.mxu0 0.0
  %v1144 = vand.u32 %v645, 4294901760
  %1145 = vmatpush1.msra.mxu0 %v1144
  %1146 = vmatprep.subr.mxu0 0.0
  %v1147 = vand.u32 %v644, 4294901760
  %1148 = vmatpush1.msra.mxu0 %v1147
  %1149 = vmatprep.subr.mxu0 0.0
  %v1150 = vand.u32 %v643, 4294901760
  %1151 = vmatpush1.msra.mxu0 %v1150
  %1152 = vmatprep.subr.mxu0 0.0
  %v1153 = vand.u32 %v642, 4294901760
  %1154 = vmatpush1.msra.mxu0 %v1153
  %1155 = vmatprep.subr.mxu0 0.0
  %1156 = vmatpush2.msra.mxu0 0.0
  %1157 = vmatprep.subr.mxu0 0.0
  %1158 = vmatpush2.msra.mxu0 0.0
  %1159 = vmatprep.subr.mxu0 0.0
  %1160 = vmatpush2.msra.mxu0 0.0
  %1161 = vmatprep.subr.mxu0 0.0
  %1162 = vmatpush2.msra.mxu0 0.0
  %1163 = vmatprep.subr.mxu0 0.0
  %1164 = vmatpush2.msra.mxu0 0.0
  %1165 = vmatprep.subr.mxu0 0.0
  %1166 = vmatpush2.msra.mxu0 0.0
  %1167 = vmatprep.subr.mxu0 0.0
  %1168 = vmatpush2.msra.mxu0 0.0
  %1169 = vmatprep.subr.mxu0 0.0
  %1170 = vmatpush2.msra.mxu0 0.0
  %1171 = vmatprep.subr.mxu0 0.0
  %1172 = vmatpush2.msra.mxu0 0.0
  %1173 = vmatprep.subr.mxu0 0.0
  %1174 = vmatpush2.msra.mxu0 0.0
  %1175 = vmatprep.subr.mxu0 0.0
  %1176 = vmatpush2.msra.mxu0 0.0
  %1177 = vmatprep.subr.mxu0 0.0
  %1178 = vmatpush2.msra.mxu0 0.0
  %1179 = vmatprep.subr.mxu0 0.0
  %1180 = vmatpush2.msra.mxu0 0.0
  %1181 = vmatprep.subr.mxu0 0.0
  %1182 = vmatpush2.msra.mxu0 0.0
  %1183 = vmatprep.subr.mxu0 0.0
  %1184 = vmatpush2.msra.mxu0 0.0
  %1185 = vmatprep.subr.mxu0 0.0
  %1186 = vmatpush2.msra.mxu0 0.0
  %1187 = vmatprep.mubr.f32.mxu0 0.0
  %v1188 = vand.u32 %v655, 4294901760
  %1189 = vmatmul.mubr.f32.gmra.mxu0 %v1188
  %v1190 = vpop.f32.mrf.mxu0
  %v1191 = vadd.f32 %v1112, %v1190
  %v1192 = vpop.f32.mrf.mxu0
  %1193 = vdwg.mxu0
  %v1194 = vmul.f32 %v1191, 0.5
  %v1195 = vmul.f32 %v1194, 1.442695
  %v1196 = vpow.pop %v1195
  %v1197 = vld [vmem:[%s1] sm:$0xf]
  %1199 = vrot.lane.b32.xlu0 %v1197, 16
  %v1200 = vpop.permute.xlu0 %1199
  %v1202 = vmul.f32 %v1196, %v1200
  %1204 = vrot.lane.b32.xlu0 %v1202, 112
  %v1205 = vpop.permute.xlu0 %1204
  %v1207 = vadd.f32 %v1191, %v1205
  %1208 = vrot.lane.b32.xlu0 %v1197, 32
  %v1209 = vpop.permute.xlu0 %1208
  %v1211 = vmul.f32 %v1196, %v1209
  %1213 = vrot.lane.b32.xlu0 %v1211, 112
  %v1214 = vpop.permute.xlu0 %1213
  %v1216 = vadd.f32 %v1191, %v1214
  %1217 = vrot.lane.b32.xlu0 %v1197, 112
  %v1218 = vpop.permute.xlu0 %1217
  %v1220 = vmul.f32 %v1196, %v1218
  %1222 = vrot.lane.b32.xlu0 %v1220, 112
  %v1223 = vpop.permute.xlu0 %1222
  %v1225 = vadd.f32 %v1191, %v1223
  %v1226 = vmul.f32 %v1196, %v1197
  %1228 = vrot.lane.b32.xlu0 %v1226, 112
  %v1229 = vpop.permute.xlu0 %1228
  %v1231 = vadd.f32 %v1191, %v1229
  %v1233 = vrot.slane %v1231, 4
  %1234 = vrot.lane.b32.xlu0 %v1233, 96
  %v1235 = vpop.permute.xlu0 %1234
  %vm1237 = vcmask 1043456
  %v1238 = vsel %vm1237, %v1207, %v1235
  %v1240 = vrot.slane %v1225, 4
  %1241 = vrot.lane.b32.xlu0 %v1240, 32
  %v1242 = vpop.permute.xlu0 %1241
  %v1244 = vsel %vm1237, %v1216, %v1242
  %1246 = vrot.lane.b32.xlu0 %v1244, 112
  %v1247 = vpop.permute.xlu0 %1246
  %vm1249 = vcmask 130048
  %v1250 = vsel %vm1249, %v1238, %v1247
  %v1251 = vld [vmem:[%s4] sm:$0xff]
  %v1252 = vld [vmem:[%s4 + $0x8] sm:$0xff]
  %v1253 = vld [vmem:[%s4 + $0x10] sm:$0xff]
  %v1254 = vld [vmem:[%s4 + $0x18] sm:$0xff]
  %v1256 = vlaneseq
  %v1257 = vshrl.u32 %v1256, 7
  %v1258 = vsub.s32 0, %v1257
  %v1259 = vrot.slane %v27, %v1258
  %vm1261 = vcmask 261120
  %v1263 = vsel %vm1261, %v1250, 0
  %1265 = vmatprep.subr.mxu0 0.0
  %1266 = vmatpush1.msra.mxu0 0.0
  %1267 = vmatprep.subr.mxu0 0.0
  %1268 = vmatpush1.msra.mxu0 0.0
  %1269 = vmatprep.subr.mxu0 0.0
  %1270 = vmatpush1.msra.mxu0 0.0
  %1271 = vmatprep.subr.mxu0 0.0
  %1272 = vmatpush1.msra.mxu0 0.0
  %1273 = vmatprep.subr.mxu0 0.0
  %1274 = vmatpush1.msra.mxu0 0.0
  %1275 = vmatprep.subr.mxu0 0.0
  %1276 = vmatpush1.msra.mxu0 0.0
  %1277 = vmatprep.subr.mxu0 0.0
  %1278 = vmatpush1.msra.mxu0 0.0
  %1279 = vmatprep.subr.mxu0 0.0
  %1280 = vmatpush1.msra.mxu0 0.0
  %1281 = vmatprep.subr.mxu0 0.0
  %1282 = vmatpush1.msra.mxu0 0.0
  %1283 = vmatprep.subr.mxu0 0.0
  %1284 = vmatpush1.msra.mxu0 0.0
  %1285 = vmatprep.subr.mxu0 0.0
  %1286 = vmatpush1.msra.mxu0 0.0
  %1287 = vmatprep.subr.mxu0 0.0
  %1288 = vmatpush1.msra.mxu0 0.0
  %1289 = vmatprep.subr.mxu0 0.0
  %v1290 = vand.u32 %v1254, 4294901760
  %1291 = vmatpush1.msra.mxu0 %v1290
  %1292 = vmatprep.subr.mxu0 0.0
  %v1293 = vand.u32 %v1253, 4294901760
  %1294 = vmatpush1.msra.mxu0 %v1293
  %1295 = vmatprep.subr.mxu0 0.0
  %v1296 = vand.u32 %v1252, 4294901760
  %1297 = vmatpush1.msra.mxu0 %v1296
  %1298 = vmatprep.subr.mxu0 0.0
  %v1299 = vand.u32 %v1251, 4294901760
  %1300 = vmatpush1.msra.mxu0 %v1299
  %1301 = vmatprep.subr.mxu0 0.0
  %1302 = vmatpush2.msra.mxu0 0.0
  %1303 = vmatprep.subr.mxu0 0.0
  %1304 = vmatpush2.msra.mxu0 0.0
  %1305 = vmatprep.subr.mxu0 0.0
  %1306 = vmatpush2.msra.mxu0 0.0
  %1307 = vmatprep.subr.mxu0 0.0
  %1308 = vmatpush2.msra.mxu0 0.0
  %1309 = vmatprep.subr.mxu0 0.0
  %1310 = vmatpush2.msra.mxu0 0.0
  %1311 = vmatprep.subr.mxu0 0.0
  %1312 = vmatpush2.msra.mxu0 0.0
  %1313 = vmatprep.subr.mxu0 0.0
  %1314 = vmatpush2.msra.mxu0 0.0
  %1315 = vmatprep.subr.mxu0 0.0
  %1316 = vmatpush2.msra.mxu0 0.0
  %1317 = vmatprep.subr.mxu0 0.0
  %1318 = vmatpush2.msra.mxu0 0.0
  %1319 = vmatprep.subr.mxu0 0.0
  %1320 = vmatpush2.msra.mxu0 0.0
  %1321 = vmatprep.subr.mxu0 0.0
  %1322 = vmatpush2.msra.mxu0 0.0
  %1323 = vmatprep.subr.mxu0 0.0
  %1324 = vmatpush2.msra.mxu0 0.0
  %1325 = vmatprep.subr.mxu0 0.0
  %1326 = vmatpush2.msra.mxu0 0.0
  %1327 = vmatprep.subr.mxu0 0.0
  %1328 = vmatpush2.msra.mxu0 0.0
  %1329 = vmatprep.subr.mxu0 0.0
  %1330 = vmatpush2.msra.mxu0 0.0
  %1331 = vmatprep.subr.mxu0 0.0
  %1332 = vmatpush2.msra.mxu0 0.0
  %1333 = vmatprep.mubr.f32.mxu0 0.0
  %v1334 = vand.u32 %v1263, 4294901760
  %v1335 = vsub.f32 %v1263, %v1334
  %v1336 = vand.u32 %v1335, 4294901760
  %v1337 = vsub.f32 %v1335, %v1336
  %v1338 = vand.u32 %v1337, 4294901760
  %1339 = vmatmul.mubr.f32.gmra.mxu0 %v1338
  %v1340 = vpop.f32.mrf.mxu0
  %v1341 = vadd.f32 %v1259, %v1340
  %v1342 = vpop.f32.mrf.mxu0
  %1343 = vdwg.mxu0
  %1344 = vmatprep.subr.mxu0 0.0
  %1345 = vmatpush1.msra.mxu0 0.0
  %1346 = vmatprep.subr.mxu0 0.0
  %1347 = vmatpush1.msra.mxu0 0.0
  %1348 = vmatprep.subr.mxu0 0.0
  %1349 = vmatpush1.msra.mxu0 0.0
  %1350 = vmatprep.subr.mxu0 0.0
  %1351 = vmatpush1.msra.mxu0 0.0
  %1352 = vmatprep.subr.mxu0 0.0
  %1353 = vmatpush1.msra.mxu0 0.0
  %1354 = vmatprep.subr.mxu0 0.0
  %1355 = vmatpush1.msra.mxu0 0.0
  %1356 = vmatprep.subr.mxu0 0.0
  %1357 = vmatpush1.msra.mxu0 0.0
  %1358 = vmatprep.subr.mxu0 0.0
  %1359 = vmatpush1.msra.mxu0 0.0
  %1360 = vmatprep.subr.mxu0 0.0
  %1361 = vmatpush1.msra.mxu0 0.0
  %1362 = vmatprep.subr.mxu0 0.0
  %1363 = vmatpush1.msra.mxu0 0.0
  %1364 = vmatprep.subr.mxu0 0.0
  %1365 = vmatpush1.msra.mxu0 0.0
  %1366 = vmatprep.subr.mxu0 0.0
  %1367 = vmatpush1.msra.mxu0 0.0
  %1368 = vmatprep.subr.mxu0 0.0
  %v1369 = vand.u32 %v1254, 4294901760
  %v1370 = vsub.f32 %v1254, %v1369
  %v1371 = vand.u32 %v1370, 4294901760
  %v1372 = vsub.f32 %v1370, %v1371
  %v1373 = vand.u32 %v1372, 4294901760
  %1374 = vmatpush1.msra.mxu0 %v1373
  %1375 = vmatprep.subr.mxu0 0.0
  %v1376 = vand.u32 %v1253, 4294901760
  %v1377 = vsub.f32 %v1253, %v1376
  %v1378 = vand.u32 %v1377, 4294901760
  %v1379 = vsub.f32 %v1377, %v1378
  %v1380 = vand.u32 %v1379, 4294901760
  %1381 = vmatpush1.msra.mxu0 %v1380
  %1382 = vmatprep.subr.mxu0 0.0
  %v1383 = vand.u32 %v1252, 4294901760
  %v1384 = vsub.f32 %v1252, %v1383
  %v1385 = vand.u32 %v1384, 4294901760
  %v1386 = vsub.f32 %v1384, %v1385
  %v1387 = vand.u32 %v1386, 4294901760
  %1388 = vmatpush1.msra.mxu0 %v1387
  %1389 = vmatprep.subr.mxu0 0.0
  %v1390 = vand.u32 %v1251, 4294901760
  %v1391 = vsub.f32 %v1251, %v1390
  %v1392 = vand.u32 %v1391, 4294901760
  %v1393 = vsub.f32 %v1391, %v1392
  %v1394 = vand.u32 %v1393, 4294901760
  %1395 = vmatpush1.msra.mxu0 %v1394
  %1396 = vmatprep.subr.mxu0 0.0
  %1397 = vmatpush2.msra.mxu0 0.0
  %1398 = vmatprep.subr.mxu0 0.0
  %1399 = vmatpush2.msra.mxu0 0.0
  %1400 = vmatprep.subr.mxu0 0.0
  %1401 = vmatpush2.msra.mxu0 0.0
  %1402 = vmatprep.subr.mxu0 0.0
  %1403 = vmatpush2.msra.mxu0 0.0
  %1404 = vmatprep.subr.mxu0 0.0
  %1405 = vmatpush2.msra.mxu0 0.0
  %1406 = vmatprep.subr.mxu0 0.0
  %1407 = vmatpush2.msra.mxu0 0.0
  %1408 = vmatprep.subr.mxu0 0.0
  %1409 = vmatpush2.msra.mxu0 0.0
  %1410 = vmatprep.subr.mxu0 0.0
  %1411 = vmatpush2.msra.mxu0 0.0
  %1412 = vmatprep.subr.mxu0 0.0
  %1413 = vmatpush2.msra.mxu0 0.0
  %1414 = vmatprep.subr.mxu0 0.0
  %1415 = vmatpush2.msra.mxu0 0.0
  %1416 = vmatprep.subr.mxu0 0.0
  %1417 = vmatpush2.msra.mxu0 0.0
  %1418 = vmatprep.subr.mxu0 0.0
  %1419 = vmatpush2.msra.mxu0 0.0
  %1420 = vmatprep.subr.mxu0 0.0
  %1421 = vmatpush2.msra.mxu0 0.0
  %1422 = vmatprep.subr.mxu0 0.0
  %1423 = vmatpush2.msra.mxu0 0.0
  %1424 = vmatprep.subr.mxu0 0.0
  %1425 = vmatpush2.msra.mxu0 0.0
  %1426 = vmatprep.subr.mxu0 0.0
  %1427 = vmatpush2.msra.mxu0 0.0
  %1428 = vmatprep.mubr.f32.mxu0 0.0
  %v1429 = vand.u32 %v1263, 4294901760
  %1430 = vmatmul.mubr.f32.gmra.mxu0 %v1429
  %v1431 = vpop.f32.mrf.mxu0
  %v1432 = vadd.f32 %v1341, %v1431
  %v1433 = vpop.f32.mrf.mxu0
  %1434 = vdwg.mxu0
  %1435 = vmatprep.subr.mxu0 0.0
  %1436 = vmatpush1.msra.mxu0 0.0
  %1437 = vmatprep.subr.mxu0 0.0
  %1438 = vmatpush1.msra.mxu0 0.0
  %1439 = vmatprep.subr.mxu0 0.0
  %1440 = vmatpush1.msra.mxu0 0.0
  %1441 = vmatprep.subr.mxu0 0.0
  %1442 = vmatpush1.msra.mxu0 0.0
  %1443 = vmatprep.subr.mxu0 0.0
  %1444 = vmatpush1.msra.mxu0 0.0
  %1445 = vmatprep.subr.mxu0 0.0
  %1446 = vmatpush1.msra.mxu0 0.0
  %1447 = vmatprep.subr.mxu0 0.0
  %1448 = vmatpush1.msra.mxu0 0.0
  %1449 = vmatprep.subr.mxu0 0.0
  %1450 = vmatpush1.msra.mxu0 0.0
  %1451 = vmatprep.subr.mxu0 0.0
  %1452 = vmatpush1.msra.mxu0 0.0
  %1453 = vmatprep.subr.mxu0 0.0
  %1454 = vmatpush1.msra.mxu0 0.0
  %1455 = vmatprep.subr.mxu0 0.0
  %1456 = vmatpush1.msra.mxu0 0.0
  %1457 = vmatprep.subr.mxu0 0.0
  %1458 = vmatpush1.msra.mxu0 0.0
  %1459 = vmatprep.subr.mxu0 0.0
  %v1460 = vand.u32 %v1254, 4294901760
  %v1461 = vsub.f32 %v1254, %v1460
  %1462 = vmatpush1.msra.mxu0 %v1461
  %1463 = vmatprep.subr.mxu0 0.0
  %v1464 = vand.u32 %v1253, 4294901760
  %v1465 = vsub.f32 %v1253, %v1464
  %1466 = vmatpush1.msra.mxu0 %v1465
  %1467 = vmatprep.subr.mxu0 0.0
  %v1468 = vand.u32 %v1252, 4294901760
  %v1469 = vsub.f32 %v1252, %v1468
  %1470 = vmatpush1.msra.mxu0 %v1469
  %1471 = vmatprep.subr.mxu0 0.0
  %v1472 = vand.u32 %v1251, 4294901760
  %v1473 = vsub.f32 %v1251, %v1472
  %1474 = vmatpush1.msra.mxu0 %v1473
  %1475 = vmatprep.subr.mxu0 0.0
  %1476 = vmatpush2.msra.mxu0 0.0
  %1477 = vmatprep.subr.mxu0 0.0
  %1478 = vmatpush2.msra.mxu0 0.0
  %1479 = vmatprep.subr.mxu0 0.0
  %1480 = vmatpush2.msra.mxu0 0.0
  %1481 = vmatprep.subr.mxu0 0.0
  %1482 = vmatpush2.msra.mxu0 0.0
  %1483 = vmatprep.subr.mxu0 0.0
  %1484 = vmatpush2.msra.mxu0 0.0
  %1485 = vmatprep.subr.mxu0 0.0
  %1486 = vmatpush2.msra.mxu0 0.0
  %1487 = vmatprep.subr.mxu0 0.0
  %1488 = vmatpush2.msra.mxu0 0.0
  %1489 = vmatprep.subr.mxu0 0.0
  %1490 = vmatpush2.msra.mxu0 0.0
  %1491 = vmatprep.subr.mxu0 0.0
  %1492 = vmatpush2.msra.mxu0 0.0
  %1493 = vmatprep.subr.mxu0 0.0
  %1494 = vmatpush2.msra.mxu0 0.0
  %1495 = vmatprep.subr.mxu0 0.0
  %1496 = vmatpush2.msra.mxu0 0.0
  %1497 = vmatprep.subr.mxu0 0.0
  %1498 = vmatpush2.msra.mxu0 0.0
  %1499 = vmatprep.subr.mxu0 0.0
  %1500 = vmatpush2.msra.mxu0 0.0
  %1501 = vmatprep.subr.mxu0 0.0
  %1502 = vmatpush2.msra.mxu0 0.0
  %1503 = vmatprep.subr.mxu0 0.0
  %1504 = vmatpush2.msra.mxu0 0.0
  %1505 = vmatprep.subr.mxu0 0.0
  %1506 = vmatpush2.msra.mxu0 0.0
  %1507 = vmatprep.mubr.f32.mxu0 0.0
  %v1508 = vand.u32 %v1263, 4294901760
  %v1509 = vsub.f32 %v1263, %v1508
  %1510 = vmatmul.mubr.f32.gmra.mxu0 %v1509
  %v1511 = vpop.f32.mrf.mxu0
  %v1512 = vadd.f32 %v1432, %v1511
  %v1513 = vpop.f32.mrf.mxu0
  %1514 = vdwg.mxu0
  %1515 = vmatprep.subr.mxu0 0.0
  %1516 = vmatpush1.msra.mxu0 0.0
  %1517 = vmatprep.subr.mxu0 0.0
  %1518 = vmatpush1.msra.mxu0 0.0
  %1519 = vmatprep.subr.mxu0 0.0
  %1520 = vmatpush1.msra.mxu0 0.0
  %1521 = vmatprep.subr.mxu0 0.0
  %1522 = vmatpush1.msra.mxu0 0.0
  %1523 = vmatprep.subr.mxu0 0.0
  %1524 = vmatpush1.msra.mxu0 0.0
  %1525 = vmatprep.subr.mxu0 0.0
  %1526 = vmatpush1.msra.mxu0 0.0
  %1527 = vmatprep.subr.mxu0 0.0
  %1528 = vmatpush1.msra.mxu0 0.0
  %1529 = vmatprep.subr.mxu0 0.0
  %1530 = vmatpush1.msra.mxu0 0.0
  %1531 = vmatprep.subr.mxu0 0.0
  %1532 = vmatpush1.msra.mxu0 0.0
  %1533 = vmatprep.subr.mxu0 0.0
  %1534 = vmatpush1.msra.mxu0 0.0
  %1535 = vmatprep.subr.mxu0 0.0
  %1536 = vmatpush1.msra.mxu0 0.0
  %1537 = vmatprep.subr.mxu0 0.0
  %1538 = vmatpush1.msra.mxu0 0.0
  %1539 = vmatprep.subr.mxu0 0.0
  %v1540 = vand.u32 %v1254, 4294901760
  %1541 = vmatpush1.msra.mxu0 %v1540
  %1542 = vmatprep.subr.mxu0 0.0
  %v1543 = vand.u32 %v1253, 4294901760
  %1544 = vmatpush1.msra.mxu0 %v1543
  %1545 = vmatprep.subr.mxu0 0.0
  %v1546 = vand.u32 %v1252, 4294901760
  %1547 = vmatpush1.msra.mxu0 %v1546
  %1548 = vmatprep.subr.mxu0 0.0
  %v1549 = vand.u32 %v1251, 4294901760
  %1550 = vmatpush1.msra.mxu0 %v1549
  %1551 = vmatprep.subr.mxu0 0.0
  %1552 = vmatpush2.msra.mxu0 0.0
  %1553 = vmatprep.subr.mxu0 0.0
  %1554 = vmatpush2.msra.mxu0 0.0
  %1555 = vmatprep.subr.mxu0 0.0
  %1556 = vmatpush2.msra.mxu0 0.0
  %1557 = vmatprep.subr.mxu0 0.0
  %1558 = vmatpush2.msra.mxu0 0.0
  %1559 = vmatprep.subr.mxu0 0.0
  %1560 = vmatpush2.msra.mxu0 0.0
  %1561 = vmatprep.subr.mxu0 0.0
  %1562 = vmatpush2.msra.mxu0 0.0
  %1563 = vmatprep.subr.mxu0 0.0
  %1564 = vmatpush2.msra.mxu0 0.0
  %1565 = vmatprep.subr.mxu0 0.0
  %1566 = vmatpush2.msra.mxu0 0.0
  %1567 = vmatprep.subr.mxu0 0.0
  %1568 = vmatpush2.msra.mxu0 0.0
  %1569 = vmatprep.subr.mxu0 0.0
  %1570 = vmatpush2.msra.mxu0 0.0
  %1571 = vmatprep.subr.mxu0 0.0
  %1572 = vmatpush2.msra.mxu0 0.0
  %1573 = vmatprep.subr.mxu0 0.0
  %1574 = vmatpush2.msra.mxu0 0.0
  %1575 = vmatprep.subr.mxu0 0.0
  %1576 = vmatpush2.msra.mxu0 0.0
  %1577 = vmatprep.subr.mxu0 0.0
  %1578 = vmatpush2.msra.mxu0 0.0
  %1579 = vmatprep.subr.mxu0 0.0
  %1580 = vmatpush2.msra.mxu0 0.0
  %1581 = vmatprep.subr.mxu0 0.0
  %1582 = vmatpush2.msra.mxu0 0.0
  %1583 = vmatprep.mubr.f32.mxu0 0.0
  %v1584 = vand.u32 %v1263, 4294901760
  %v1585 = vsub.f32 %v1263, %v1584
  %v1586 = vand.u32 %v1585, 4294901760
  %1587 = vmatmul.mubr.f32.gmra.mxu0 %v1586
  %v1588 = vpop.f32.mrf.mxu0
  %v1589 = vadd.f32 %v1512, %v1588
  %v1590 = vpop.f32.mrf.mxu0
  %1591 = vdwg.mxu0
  %1592 = vmatprep.subr.mxu0 0.0
  %1593 = vmatpush1.msra.mxu0 0.0
  %1594 = vmatprep.subr.mxu0 0.0
  %1595 = vmatpush1.msra.mxu0 0.0
  %1596 = vmatprep.subr.mxu0 0.0
  %1597 = vmatpush1.msra.mxu0 0.0
  %1598 = vmatprep.subr.mxu0 0.0
  %1599 = vmatpush1.msra.mxu0 0.0
  %1600 = vmatprep.subr.mxu0 0.0
  %1601 = vmatpush1.msra.mxu0 0.0
  %1602 = vmatprep.subr.mxu0 0.0
  %1603 = vmatpush1.msra.mxu0 0.0
  %1604 = vmatprep.subr.mxu0 0.0
  %1605 = vmatpush1.msra.mxu0 0.0
  %1606 = vmatprep.subr.mxu0 0.0
  %1607 = vmatpush1.msra.mxu0 0.0
  %1608 = vmatprep.subr.mxu0 0.0
  %1609 = vmatpush1.msra.mxu0 0.0
  %1610 = vmatprep.subr.mxu0 0.0
  %1611 = vmatpush1.msra.mxu0 0.0
  %1612 = vmatprep.subr.mxu0 0.0
  %1613 = vmatpush1.msra.mxu0 0.0
  %1614 = vmatprep.subr.mxu0 0.0
  %1615 = vmatpush1.msra.mxu0 0.0
  %1616 = vmatprep.subr.mxu0 0.0
  %v1617 = vand.u32 %v1254, 4294901760
  %v1618 = vsub.f32 %v1254, %v1617
  %v1619 = vand.u32 %v1618, 4294901760
  %1620 = vmatpush1.msra.mxu0 %v1619
  %1621 = vmatprep.subr.mxu0 0.0
  %v1622 = vand.u32 %v1253, 4294901760
  %v1623 = vsub.f32 %v1253, %v1622
  %v1624 = vand.u32 %v1623, 4294901760
  %1625 = vmatpush1.msra.mxu0 %v1624
  %1626 = vmatprep.subr.mxu0 0.0
  %v1627 = vand.u32 %v1252, 4294901760
  %v1628 = vsub.f32 %v1252, %v1627
  %v1629 = vand.u32 %v1628, 4294901760
  %1630 = vmatpush1.msra.mxu0 %v1629
  %1631 = vmatprep.subr.mxu0 0.0
  %v1632 = vand.u32 %v1251, 4294901760
  %v1633 = vsub.f32 %v1251, %v1632
  %v1634 = vand.u32 %v1633, 4294901760
  %1635 = vmatpush1.msra.mxu0 %v1634
  %1636 = vmatprep.subr.mxu0 0.0
  %1637 = vmatpush2.msra.mxu0 0.0
  %1638 = vmatprep.subr.mxu0 0.0
  %1639 = vmatpush2.msra.mxu0 0.0
  %1640 = vmatprep.subr.mxu0 0.0
  %1641 = vmatpush2.msra.mxu0 0.0
  %1642 = vmatprep.subr.mxu0 0.0
  %1643 = vmatpush2.msra.mxu0 0.0
  %1644 = vmatprep.subr.mxu0 0.0
  %1645 = vmatpush2.msra.mxu0 0.0
  %1646 = vmatprep.subr.mxu0 0.0
  %1647 = vmatpush2.msra.mxu0 0.0
  %1648 = vmatprep.subr.mxu0 0.0
  %1649 = vmatpush2.msra.mxu0 0.0
  %1650 = vmatprep.subr.mxu0 0.0
  %1651 = vmatpush2.msra.mxu0 0.0
  %1652 = vmatprep.subr.mxu0 0.0
  %1653 = vmatpush2.msra.mxu0 0.0
  %1654 = vmatprep.subr.mxu0 0.0
  %1655 = vmatpush2.msra.mxu0 0.0
  %1656 = vmatprep.subr.mxu0 0.0
  %1657 = vmatpush2.msra.mxu0 0.0
  %1658 = vmatprep.subr.mxu0 0.0
  %1659 = vmatpush2.msra.mxu0 0.0
  %1660 = vmatprep.subr.mxu0 0.0
  %1661 = vmatpush2.msra.mxu0 0.0
  %1662 = vmatprep.subr.mxu0 0.0
  %1663 = vmatpush2.msra.mxu0 0.0
  %1664 = vmatprep.subr.mxu0 0.0
  %1665 = vmatpush2.msra.mxu0 0.0
  %1666 = vmatprep.subr.mxu0 0.0
  %1667 = vmatpush2.msra.mxu0 0.0
  %1668 = vmatprep.mubr.f32.mxu0 0.0
  %v1669 = vand.u32 %v1263, 4294901760
  %1670 = vmatmul.mubr.f32.gmra.mxu0 %v1669
  %v1671 = vpop.f32.mrf.mxu0
  %v1672 = vadd.f32 %v1589, %v1671
  %v1673 = vpop.f32.mrf.mxu0
  %1674 = vdwg.mxu0
  %1675 = vmatprep.subr.mxu0 0.0
  %1676 = vmatpush1.msra.mxu0 0.0
  %1677 = vmatprep.subr.mxu0 0.0
  %1678 = vmatpush1.msra.mxu0 0.0
  %1679 = vmatprep.subr.mxu0 0.0
  %1680 = vmatpush1.msra.mxu0 0.0
  %1681 = vmatprep.subr.mxu0 0.0
  %1682 = vmatpush1.msra.mxu0 0.0
  %1683 = vmatprep.subr.mxu0 0.0
  %1684 = vmatpush1.msra.mxu0 0.0
  %1685 = vmatprep.subr.mxu0 0.0
  %1686 = vmatpush1.msra.mxu0 0.0
  %1687 = vmatprep.subr.mxu0 0.0
  %1688 = vmatpush1.msra.mxu0 0.0
  %1689 = vmatprep.subr.mxu0 0.0
  %1690 = vmatpush1.msra.mxu0 0.0
  %1691 = vmatprep.subr.mxu0 0.0
  %1692 = vmatpush1.msra.mxu0 0.0
  %1693 = vmatprep.subr.mxu0 0.0
  %1694 = vmatpush1.msra.mxu0 0.0
  %1695 = vmatprep.subr.mxu0 0.0
  %1696 = vmatpush1.msra.mxu0 0.0
  %1697 = vmatprep.subr.mxu0 0.0
  %1698 = vmatpush1.msra.mxu0 0.0
  %1699 = vmatprep.subr.mxu0 0.0
  %v1700 = vand.u32 %v1254, 4294901760
  %1701 = vmatpush1.msra.mxu0 %v1700
  %1702 = vmatprep.subr.mxu0 0.0
  %v1703 = vand.u32 %v1253, 4294901760
  %1704 = vmatpush1.msra.mxu0 %v1703
  %1705 = vmatprep.subr.mxu0 0.0
  %v1706 = vand.u32 %v1252, 4294901760
  %1707 = vmatpush1.msra.mxu0 %v1706
  %1708 = vmatprep.subr.mxu0 0.0
  %v1709 = vand.u32 %v1251, 4294901760
  %1710 = vmatpush1.msra.mxu0 %v1709
  %1711 = vmatprep.subr.mxu0 0.0
  %1712 = vmatpush2.msra.mxu0 0.0
  %1713 = vmatprep.subr.mxu0 0.0
  %1714 = vmatpush2.msra.mxu0 0.0
  %1715 = vmatprep.subr.mxu0 0.0
  %1716 = vmatpush2.msra.mxu0 0.0
  %1717 = vmatprep.subr.mxu0 0.0
  %1718 = vmatpush2.msra.mxu0 0.0
  %1719 = vmatprep.subr.mxu0 0.0
  %1720 = vmatpush2.msra.mxu0 0.0
  %1721 = vmatprep.subr.mxu0 0.0
  %1722 = vmatpush2.msra.mxu0 0.0
  %1723 = vmatprep.subr.mxu0 0.0
  %1724 = vmatpush2.msra.mxu0 0.0
  %1725 = vmatprep.subr.mxu0 0.0
  %1726 = vmatpush2.msra.mxu0 0.0
  %1727 = vmatprep.subr.mxu0 0.0
  %1728 = vmatpush2.msra.mxu0 0.0
  %1729 = vmatprep.subr.mxu0 0.0
  %1730 = vmatpush2.msra.mxu0 0.0
  %1731 = vmatprep.subr.mxu0 0.0
  %1732 = vmatpush2.msra.mxu0 0.0
  %1733 = vmatprep.subr.mxu0 0.0
  %1734 = vmatpush2.msra.mxu0 0.0
  %1735 = vmatprep.subr.mxu0 0.0
  %1736 = vmatpush2.msra.mxu0 0.0
  %1737 = vmatprep.subr.mxu0 0.0
  %1738 = vmatpush2.msra.mxu0 0.0
  %1739 = vmatprep.subr.mxu0 0.0
  %1740 = vmatpush2.msra.mxu0 0.0
  %1741 = vmatprep.subr.mxu0 0.0
  %1742 = vmatpush2.msra.mxu0 0.0
  %1743 = vmatprep.mubr.f32.mxu0 0.0
  %v1744 = vand.u32 %v1263, 4294901760
  %1745 = vmatmul.mubr.f32.gmra.mxu0 %v1744
  %v1746 = vpop.f32.mrf.mxu0
  %v1747 = vadd.f32 %v1672, %v1746
  %v1748 = vpop.f32.mrf.mxu0
  %1749 = vdwg.mxu0
  %v1750 = vmax.f32 %v1747, 0.0
  %v1751 = vld [vmem:[%s5] sm:$0xff]
  %v1752 = vld [vmem:[%s5 + $0x8] sm:$0xff]
  %v1753 = vld [vmem:[%s5 + $0x10] sm:$0xff]
  %v1754 = vld [vmem:[%s5 + $0x18] sm:$0xff]
  %v1755 = vld [vmem:[%s5 + $0x20] sm:$0xff]
  %v1756 = vld [vmem:[%s5 + $0x28] sm:$0xff]
  %v1757 = vld [vmem:[%s5 + $0x30] sm:$0xff]
  %v1758 = vld [vmem:[%s5 + $0x38] sm:$0xff]
  %v1760 = vlaneseq
  %v1761 = vshrl.u32 %v1760, 7
  %v1762 = vsub.s32 0, %v1761
  %v1763 = vrot.slane %v28, %v1762
  %v1764 = vlaneseq
  %v1765 = vshrl.u32 %v1764, 7
  %v1766 = vsub.s32 1, %v1765
  %v1767 = vrot.slane %v28, %v1766
  %1768 = vrot.lane.b32.xlu0 %v1763, 64
  %v1769 = vpop.permute.xlu0 %1768
  %1770 = vrot.lane.b32.xlu0 %v1767, 64
  %v1771 = vpop.permute.xlu0 %1770
  %v1772 = vsel %vm653, %v1769, %v1771
  %v1775 = vsel %vm653, %v1750, 0
  %1777 = vmatprep.subr.mxu0 0.0
  %1778 = vmatpush1.msra.mxu0 0.0
  %1779 = vmatprep.subr.mxu0 0.0
  %1780 = vmatpush1.msra.mxu0 0.0
  %1781 = vmatprep.subr.mxu0 0.0
  %1782 = vmatpush1.msra.mxu0 0.0
  %1783 = vmatprep.subr.mxu0 0.0
  %1784 = vmatpush1.msra.mxu0 0.0
  %1785 = vmatprep.subr.mxu0 0.0
  %1786 = vmatpush1.msra.mxu0 0.0
  %1787 = vmatprep.subr.mxu0 0.0
  %1788 = vmatpush1.msra.mxu0 0.0
  %1789 = vmatprep.subr.mxu0 0.0
  %1790 = vmatpush1.msra.mxu0 0.0
  %1791 = vmatprep.subr.mxu0 0.0
  %1792 = vmatpush1.msra.mxu0 0.0
  %1793 = vmatprep.subr.mxu0 0.0
  %v1794 = vand.u32 %v1758, 4294901760
  %1795 = vmatpush1.msra.mxu0 %v1794
  %1796 = vmatprep.subr.mxu0 0.0
  %v1797 = vand.u32 %v1757, 4294901760
  %1798 = vmatpush1.msra.mxu0 %v1797
  %1799 = vmatprep.subr.mxu0 0.0
  %v1800 = vand.u32 %v1756, 4294901760
  %1801 = vmatpush1.msra.mxu0 %v1800
  %1802 = vmatprep.subr.mxu0 0.0
  %v1803 = vand.u32 %v1755, 4294901760
  %1804 = vmatpush1.msra.mxu0 %v1803
  %1805 = vmatprep.subr.mxu0 0.0
  %v1806 = vand.u32 %v1754, 4294901760
  %1807 = vmatpush1.msra.mxu0 %v1806
  %1808 = vmatprep.subr.mxu0 0.0
  %v1809 = vand.u32 %v1753, 4294901760
  %1810 = vmatpush1.msra.mxu0 %v1809
  %1811 = vmatprep.subr.mxu0 0.0
  %v1812 = vand.u32 %v1752, 4294901760
  %1813 = vmatpush1.msra.mxu0 %v1812
  %1814 = vmatprep.subr.mxu0 0.0
  %v1815 = vand.u32 %v1751, 4294901760
  %1816 = vmatpush1.msra.mxu0 %v1815
  %1817 = vmatprep.subr.mxu0 0.0
  %1818 = vmatpush2.msra.mxu0 0.0
  %1819 = vmatprep.subr.mxu0 0.0
  %1820 = vmatpush2.msra.mxu0 0.0
  %1821 = vmatprep.subr.mxu0 0.0
  %1822 = vmatpush2.msra.mxu0 0.0
  %1823 = vmatprep.subr.mxu0 0.0
  %1824 = vmatpush2.msra.mxu0 0.0
  %1825 = vmatprep.subr.mxu0 0.0
  %1826 = vmatpush2.msra.mxu0 0.0
  %1827 = vmatprep.subr.mxu0 0.0
  %1828 = vmatpush2.msra.mxu0 0.0
  %1829 = vmatprep.subr.mxu0 0.0
  %1830 = vmatpush2.msra.mxu0 0.0
  %1831 = vmatprep.subr.mxu0 0.0
  %1832 = vmatpush2.msra.mxu0 0.0
  %1833 = vmatprep.subr.mxu0 0.0
  %1834 = vmatpush2.msra.mxu0 0.0
  %1835 = vmatprep.subr.mxu0 0.0
  %1836 = vmatpush2.msra.mxu0 0.0
  %1837 = vmatprep.subr.mxu0 0.0
  %1838 = vmatpush2.msra.mxu0 0.0
  %1839 = vmatprep.subr.mxu0 0.0
  %1840 = vmatpush2.msra.mxu0 0.0
  %1841 = vmatprep.subr.mxu0 0.0
  %1842 = vmatpush2.msra.mxu0 0.0
  %1843 = vmatprep.subr.mxu0 0.0
  %1844 = vmatpush2.msra.mxu0 0.0
  %1845 = vmatprep.subr.mxu0 0.0
  %1846 = vmatpush2.msra.mxu0 0.0
  %1847 = vmatprep.subr.mxu0 0.0
  %1848 = vmatpush2.msra.mxu0 0.0
  %1849 = vmatprep.mubr.f32.mxu0 0.0
  %v1850 = vand.u32 %v1775, 4294901760
  %v1851 = vsub.f32 %v1775, %v1850
  %v1852 = vand.u32 %v1851, 4294901760
  %v1853 = vsub.f32 %v1851, %v1852
  %v1854 = vand.u32 %v1853, 4294901760
  %1855 = vmatmul.mubr.f32.gmra.mxu0 %v1854
  %v1856 = vpop.f32.mrf.mxu0
  %v1857 = vadd.f32 %v1772, %v1856
  %v1858 = vpop.f32.mrf.mxu0
  %1859 = vdwg.mxu0
  %1860 = vmatprep.subr.mxu0 0.0
  %1861 = vmatpush1.msra.mxu0 0.0
  %1862 = vmatprep.subr.mxu0 0.0
  %1863 = vmatpush1.msra.mxu0 0.0
  %1864 = vmatprep.subr.mxu0 0.0
  %1865 = vmatpush1.msra.mxu0 0.0
  %1866 = vmatprep.subr.mxu0 0.0
  %1867 = vmatpush1.msra.mxu0 0.0
  %1868 = vmatprep.subr.mxu0 0.0
  %1869 = vmatpush1.msra.mxu0 0.0
  %1870 = vmatprep.subr.mxu0 0.0
  %1871 = vmatpush1.msra.mxu0 0.0
  %1872 = vmatprep.subr.mxu0 0.0
  %1873 = vmatpush1.msra.mxu0 0.0
  %1874 = vmatprep.subr.mxu0 0.0
  %1875 = vmatpush1.msra.mxu0 0.0
  %1876 = vmatprep.subr.mxu0 0.0
  %v1877 = vand.u32 %v1758, 4294901760
  %v1878 = vsub.f32 %v1758, %v1877
  %v1879 = vand.u32 %v1878, 4294901760
  %v1880 = vsub.f32 %v1878, %v1879
  %v1881 = vand.u32 %v1880, 4294901760
  %1882 = vmatpush1.msra.mxu0 %v1881
  %1883 = vmatprep.subr.mxu0 0.0
  %v1884 = vand.u32 %v1757, 4294901760
  %v1885 = vsub.f32 %v1757, %v1884
  %v1886 = vand.u32 %v1885, 4294901760
  %v1887 = vsub.f32 %v1885, %v1886
  %v1888 = vand.u32 %v1887, 4294901760
  %1889 = vmatpush1.msra.mxu0 %v1888
  %1890 = vmatprep.subr.mxu0 0.0
  %v1891 = vand.u32 %v1756, 4294901760
  %v1892 = vsub.f32 %v1756, %v1891
  %v1893 = vand.u32 %v1892, 4294901760
  %v1894 = vsub.f32 %v1892, %v1893
  %v1895 = vand.u32 %v1894, 4294901760
  %1896 = vmatpush1.msra.mxu0 %v1895
  %1897 = vmatprep.subr.mxu0 0.0
  %v1898 = vand.u32 %v1755, 4294901760
  %v1899 = vsub.f32 %v1755, %v1898
  %v1900 = vand.u32 %v1899, 4294901760
  %v1901 = vsub.f32 %v1899, %v1900
  %v1902 = vand.u32 %v1901, 4294901760
  %1903 = vmatpush1.msra.mxu0 %v1902
  %1904 = vmatprep.subr.mxu0 0.0
  %v1905 = vand.u32 %v1754, 4294901760
  %v1906 = vsub.f32 %v1754, %v1905
  %v1907 = vand.u32 %v1906, 4294901760
  %v1908 = vsub.f32 %v1906, %v1907
  %v1909 = vand.u32 %v1908, 4294901760
  %1910 = vmatpush1.msra.mxu0 %v1909
  %1911 = vmatprep.subr.mxu0 0.0
  %v1912 = vand.u32 %v1753, 4294901760
  %v1913 = vsub.f32 %v1753, %v1912
  %v1914 = vand.u32 %v1913, 4294901760
  %v1915 = vsub.f32 %v1913, %v1914
  %v1916 = vand.u32 %v1915, 4294901760
  %1917 = vmatpush1.msra.mxu0 %v1916
  %1918 = vmatprep.subr.mxu0 0.0
  %v1919 = vand.u32 %v1752, 4294901760
  %v1920 = vsub.f32 %v1752, %v1919
  %v1921 = vand.u32 %v1920, 4294901760
  %v1922 = vsub.f32 %v1920, %v1921
  %v1923 = vand.u32 %v1922, 4294901760
  %1924 = vmatpush1.msra.mxu0 %v1923
  %1925 = vmatprep.subr.mxu0 0.0
  %v1926 = vand.u32 %v1751, 4294901760
  %v1927 = vsub.f32 %v1751, %v1926
  %v1928 = vand.u32 %v1927, 4294901760
  %v1929 = vsub.f32 %v1927, %v1928
  %v1930 = vand.u32 %v1929, 4294901760
  %1931 = vmatpush1.msra.mxu0 %v1930
  %1932 = vmatprep.subr.mxu0 0.0
  %1933 = vmatpush2.msra.mxu0 0.0
  %1934 = vmatprep.subr.mxu0 0.0
  %1935 = vmatpush2.msra.mxu0 0.0
  %1936 = vmatprep.subr.mxu0 0.0
  %1937 = vmatpush2.msra.mxu0 0.0
  %1938 = vmatprep.subr.mxu0 0.0
  %1939 = vmatpush2.msra.mxu0 0.0
  %1940 = vmatprep.subr.mxu0 0.0
  %1941 = vmatpush2.msra.mxu0 0.0
  %1942 = vmatprep.subr.mxu0 0.0
  %1943 = vmatpush2.msra.mxu0 0.0
  %1944 = vmatprep.subr.mxu0 0.0
  %1945 = vmatpush2.msra.mxu0 0.0
  %1946 = vmatprep.subr.mxu0 0.0
  %1947 = vmatpush2.msra.mxu0 0.0
  %1948 = vmatprep.subr.mxu0 0.0
  %1949 = vmatpush2.msra.mxu0 0.0
  %1950 = vmatprep.subr.mxu0 0.0
  %1951 = vmatpush2.msra.mxu0 0.0
  %1952 = vmatprep.subr.mxu0 0.0
  %1953 = vmatpush2.msra.mxu0 0.0
  %1954 = vmatprep.subr.mxu0 0.0
  %1955 = vmatpush2.msra.mxu0 0.0
  %1956 = vmatprep.subr.mxu0 0.0
  %1957 = vmatpush2.msra.mxu0 0.0
  %1958 = vmatprep.subr.mxu0 0.0
  %1959 = vmatpush2.msra.mxu0 0.0
  %1960 = vmatprep.subr.mxu0 0.0
  %1961 = vmatpush2.msra.mxu0 0.0
  %1962 = vmatprep.subr.mxu0 0.0
  %1963 = vmatpush2.msra.mxu0 0.0
  %1964 = vmatprep.mubr.f32.mxu0 0.0
  %v1965 = vand.u32 %v1775, 4294901760
  %1966 = vmatmul.mubr.f32.gmra.mxu0 %v1965
  %v1967 = vpop.f32.mrf.mxu0
  %v1968 = vadd.f32 %v1857, %v1967
  %v1969 = vpop.f32.mrf.mxu0
  %1970 = vdwg.mxu0
  %1971 = vmatprep.subr.mxu0 0.0
  %1972 = vmatpush1.msra.mxu0 0.0
  %1973 = vmatprep.subr.mxu0 0.0
  %1974 = vmatpush1.msra.mxu0 0.0
  %1975 = vmatprep.subr.mxu0 0.0
  %1976 = vmatpush1.msra.mxu0 0.0
  %1977 = vmatprep.subr.mxu0 0.0
  %1978 = vmatpush1.msra.mxu0 0.0
  %1979 = vmatprep.subr.mxu0 0.0
  %1980 = vmatpush1.msra.mxu0 0.0
  %1981 = vmatprep.subr.mxu0 0.0
  %1982 = vmatpush1.msra.mxu0 0.0
  %1983 = vmatprep.subr.mxu0 0.0
  %1984 = vmatpush1.msra.mxu0 0.0
  %1985 = vmatprep.subr.mxu0 0.0
  %1986 = vmatpush1.msra.mxu0 0.0
  %1987 = vmatprep.subr.mxu0 0.0
  %v1988 = vand.u32 %v1758, 4294901760
  %v1989 = vsub.f32 %v1758, %v1988
  %1990 = vmatpush1.msra.mxu0 %v1989
  %1991 = vmatprep.subr.mxu0 0.0
  %v1992 = vand.u32 %v1757, 4294901760
  %v1993 = vsub.f32 %v1757, %v1992
  %1994 = vmatpush1.msra.mxu0 %v1993
  %1995 = vmatprep.subr.mxu0 0.0
  %v1996 = vand.u32 %v1756, 4294901760
  %v1997 = vsub.f32 %v1756, %v1996
  %1998 = vmatpush1.msra.mxu0 %v1997
  %1999 = vmatprep.subr.mxu0 0.0
  %v2000 = vand.u32 %v1755, 4294901760
  %v2001 = vsub.f32 %v1755, %v2000
  %2002 = vmatpush1.msra.mxu0 %v2001
  %2003 = vmatprep.subr.mxu0 0.0
  %v2004 = vand.u32 %v1754, 4294901760
  %v2005 = vsub.f32 %v1754, %v2004
  %2006 = vmatpush1.msra.mxu0 %v2005
  %2007 = vmatprep.subr.mxu0 0.0
  %v2008 = vand.u32 %v1753, 4294901760
  %v2009 = vsub.f32 %v1753, %v2008
  %2010 = vmatpush1.msra.mxu0 %v2009
  %2011 = vmatprep.subr.mxu0 0.0
  %v2012 = vand.u32 %v1752, 4294901760
  %v2013 = vsub.f32 %v1752, %v2012
  %2014 = vmatpush1.msra.mxu0 %v2013
  %2015 = vmatprep.subr.mxu0 0.0
  %v2016 = vand.u32 %v1751, 4294901760
  %v2017 = vsub.f32 %v1751, %v2016
  %2018 = vmatpush1.msra.mxu0 %v2017
  %2019 = vmatprep.subr.mxu0 0.0
  %2020 = vmatpush2.msra.mxu0 0.0
  %2021 = vmatprep.subr.mxu0 0.0
  %2022 = vmatpush2.msra.mxu0 0.0
  %2023 = vmatprep.subr.mxu0 0.0
  %2024 = vmatpush2.msra.mxu0 0.0
  %2025 = vmatprep.subr.mxu0 0.0
  %2026 = vmatpush2.msra.mxu0 0.0
  %2027 = vmatprep.subr.mxu0 0.0
  %2028 = vmatpush2.msra.mxu0 0.0
  %2029 = vmatprep.subr.mxu0 0.0
  %2030 = vmatpush2.msra.mxu0 0.0
  %2031 = vmatprep.subr.mxu0 0.0
  %2032 = vmatpush2.msra.mxu0 0.0
  %2033 = vmatprep.subr.mxu0 0.0
  %2034 = vmatpush2.msra.mxu0 0.0
  %2035 = vmatprep.subr.mxu0 0.0
  %2036 = vmatpush2.msra.mxu0 0.0
  %2037 = vmatprep.subr.mxu0 0.0
  %2038 = vmatpush2.msra.mxu0 0.0
  %2039 = vmatprep.subr.mxu0 0.0
  %2040 = vmatpush2.msra.mxu0 0.0
  %2041 = vmatprep.subr.mxu0 0.0
  %2042 = vmatpush2.msra.mxu0 0.0
  %2043 = vmatprep.subr.mxu0 0.0
  %2044 = vmatpush2.msra.mxu0 0.0
  %2045 = vmatprep.subr.mxu0 0.0
  %2046 = vmatpush2.msra.mxu0 0.0
  %2047 = vmatprep.subr.mxu0 0.0
  %2048 = vmatpush2.msra.mxu0 0.0
  %2049 = vmatprep.subr.mxu0 0.0
  %2050 = vmatpush2.msra.mxu0 0.0
  %2051 = vmatprep.mubr.f32.mxu0 0.0
  %v2052 = vand.u32 %v1775, 4294901760
  %v2053 = vsub.f32 %v1775, %v2052
  %2054 = vmatmul.mubr.f32.gmra.mxu0 %v2053
  %v2055 = vpop.f32.mrf.mxu0
  %v2056 = vadd.f32 %v1968, %v2055
  %v2057 = vpop.f32.mrf.mxu0
  %2058 = vdwg.mxu0
  %2059 = vmatprep.subr.mxu0 0.0
  %2060 = vmatpush1.msra.mxu0 0.0
  %2061 = vmatprep.subr.mxu0 0.0
  %2062 = vmatpush1.msra.mxu0 0.0
  %2063 = vmatprep.subr.mxu0 0.0
  %2064 = vmatpush1.msra.mxu0 0.0
  %2065 = vmatprep.subr.mxu0 0.0
  %2066 = vmatpush1.msra.mxu0 0.0
  %2067 = vmatprep.subr.mxu0 0.0
  %2068 = vmatpush1.msra.mxu0 0.0
  %2069 = vmatprep.subr.mxu0 0.0
  %2070 = vmatpush1.msra.mxu0 0.0
  %2071 = vmatprep.subr.mxu0 0.0
  %2072 = vmatpush1.msra.mxu0 0.0
  %2073 = vmatprep.subr.mxu0 0.0
  %2074 = vmatpush1.msra.mxu0 0.0
  %2075 = vmatprep.subr.mxu0 0.0
  %v2076 = vand.u32 %v1758, 4294901760
  %2077 = vmatpush1.msra.mxu0 %v2076
  %2078 = vmatprep.subr.mxu0 0.0
  %v2079 = vand.u32 %v1757, 4294901760
  %2080 = vmatpush1.msra.mxu0 %v2079
  %2081 = vmatprep.subr.mxu0 0.0
  %v2082 = vand.u32 %v1756, 4294901760
  %2083 = vmatpush1.msra.mxu0 %v2082
  %2084 = vmatprep.subr.mxu0 0.0
  %v2085 = vand.u32 %v1755, 4294901760
  %2086 = vmatpush1.msra.mxu0 %v2085
  %2087 = vmatprep.subr.mxu0 0.0
  %v2088 = vand.u32 %v1754, 4294901760
  %2089 = vmatpush1.msra.mxu0 %v2088
  %2090 = vmatprep.subr.mxu0 0.0
  %v2091 = vand.u32 %v1753, 4294901760
  %2092 = vmatpush1.msra.mxu0 %v2091
  %2093 = vmatprep.subr.mxu0 0.0
  %v2094 = vand.u32 %v1752, 4294901760
  %2095 = vmatpush1.msra.mxu0 %v2094
  %2096 = vmatprep.subr.mxu0 0.0
  %v2097 = vand.u32 %v1751, 4294901760
  %2098 = vmatpush1.msra.mxu0 %v2097
  %2099 = vmatprep.subr.mxu0 0.0
  %2100 = vmatpush2.msra.mxu0 0.0
  %2101 = vmatprep.subr.mxu0 0.0
  %2102 = vmatpush2.msra.mxu0 0.0
  %2103 = vmatprep.subr.mxu0 0.0
  %2104 = vmatpush2.msra.mxu0 0.0
  %2105 = vmatprep.subr.mxu0 0.0
  %2106 = vmatpush2.msra.mxu0 0.0
  %2107 = vmatprep.subr.mxu0 0.0
  %2108 = vmatpush2.msra.mxu0 0.0
  %2109 = vmatprep.subr.mxu0 0.0
  %2110 = vmatpush2.msra.mxu0 0.0
  %2111 = vmatprep.subr.mxu0 0.0
  %2112 = vmatpush2.msra.mxu0 0.0
  %2113 = vmatprep.subr.mxu0 0.0
  %2114 = vmatpush2.msra.mxu0 0.0
  %2115 = vmatprep.subr.mxu0 0.0
  %2116 = vmatpush2.msra.mxu0 0.0
  %2117 = vmatprep.subr.mxu0 0.0
  %2118 = vmatpush2.msra.mxu0 0.0
  %2119 = vmatprep.subr.mxu0 0.0
  %2120 = vmatpush2.msra.mxu0 0.0
  %2121 = vmatprep.subr.mxu0 0.0
  %2122 = vmatpush2.msra.mxu0 0.0
  %2123 = vmatprep.subr.mxu0 0.0
  %2124 = vmatpush2.msra.mxu0 0.0
  %2125 = vmatprep.subr.mxu0 0.0
  %2126 = vmatpush2.msra.mxu0 0.0
  %2127 = vmatprep.subr.mxu0 0.0
  %2128 = vmatpush2.msra.mxu0 0.0
  %2129 = vmatprep.subr.mxu0 0.0
  %2130 = vmatpush2.msra.mxu0 0.0
  %2131 = vmatprep.mubr.f32.mxu0 0.0
  %v2132 = vand.u32 %v1775, 4294901760
  %v2133 = vsub.f32 %v1775, %v2132
  %v2134 = vand.u32 %v2133, 4294901760
  %2135 = vmatmul.mubr.f32.gmra.mxu0 %v2134
  %v2136 = vpop.f32.mrf.mxu0
  %v2137 = vadd.f32 %v2056, %v2136
  %v2138 = vpop.f32.mrf.mxu0
  %2139 = vdwg.mxu0
  %2140 = vmatprep.subr.mxu0 0.0
  %2141 = vmatpush1.msra.mxu0 0.0
  %2142 = vmatprep.subr.mxu0 0.0
  %2143 = vmatpush1.msra.mxu0 0.0
  %2144 = vmatprep.subr.mxu0 0.0
  %2145 = vmatpush1.msra.mxu0 0.0
  %2146 = vmatprep.subr.mxu0 0.0
  %2147 = vmatpush1.msra.mxu0 0.0
  %2148 = vmatprep.subr.mxu0 0.0
  %2149 = vmatpush1.msra.mxu0 0.0
  %2150 = vmatprep.subr.mxu0 0.0
  %2151 = vmatpush1.msra.mxu0 0.0
  %2152 = vmatprep.subr.mxu0 0.0
  %2153 = vmatpush1.msra.mxu0 0.0
  %2154 = vmatprep.subr.mxu0 0.0
  %2155 = vmatpush1.msra.mxu0 0.0
  %2156 = vmatprep.subr.mxu0 0.0
  %v2157 = vand.u32 %v1758, 4294901760
  %v2158 = vsub.f32 %v1758, %v2157
  %v2159 = vand.u32 %v2158, 4294901760
  %2160 = vmatpush1.msra.mxu0 %v2159
  %2161 = vmatprep.subr.mxu0 0.0
  %v2162 = vand.u32 %v1757, 4294901760
  %v2163 = vsub.f32 %v1757, %v2162
  %v2164 = vand.u32 %v2163, 4294901760
  %2165 = vmatpush1.msra.mxu0 %v2164
  %2166 = vmatprep.subr.mxu0 0.0
  %v2167 = vand.u32 %v1756, 4294901760
  %v2168 = vsub.f32 %v1756, %v2167
  %v2169 = vand.u32 %v2168, 4294901760
  %2170 = vmatpush1.msra.mxu0 %v2169
  %2171 = vmatprep.subr.mxu0 0.0
  %v2172 = vand.u32 %v1755, 4294901760
  %v2173 = vsub.f32 %v1755, %v2172
  %v2174 = vand.u32 %v2173, 4294901760
  %2175 = vmatpush1.msra.mxu0 %v2174
  %2176 = vmatprep.subr.mxu0 0.0
  %v2177 = vand.u32 %v1754, 4294901760
  %v2178 = vsub.f32 %v1754, %v2177
  %v2179 = vand.u32 %v2178, 4294901760
  %2180 = vmatpush1.msra.mxu0 %v2179
  %2181 = vmatprep.subr.mxu0 0.0
  %v2182 = vand.u32 %v1753, 4294901760
  %v2183 = vsub.f32 %v1753, %v2182
  %v2184 = vand.u32 %v2183, 4294901760
  %2185 = vmatpush1.msra.mxu0 %v2184
  %2186 = vmatprep.subr.mxu0 0.0
  %v2187 = vand.u32 %v1752, 4294901760
  %v2188 = vsub.f32 %v1752, %v2187
  %v2189 = vand.u32 %v2188, 4294901760
  %2190 = vmatpush1.msra.mxu0 %v2189
  %2191 = vmatprep.subr.mxu0 0.0
  %v2192 = vand.u32 %v1751, 4294901760
  %v2193 = vsub.f32 %v1751, %v2192
  %v2194 = vand.u32 %v2193, 4294901760
  %2195 = vmatpush1.msra.mxu0 %v2194
  %2196 = vmatprep.subr.mxu0 0.0
  %2197 = vmatpush2.msra.mxu0 0.0
  %2198 = vmatprep.subr.mxu0 0.0
  %2199 = vmatpush2.msra.mxu0 0.0
  %2200 = vmatprep.subr.mxu0 0.0
  %2201 = vmatpush2.msra.mxu0 0.0
  %2202 = vmatprep.subr.mxu0 0.0
  %2203 = vmatpush2.msra.mxu0 0.0
  %2204 = vmatprep.subr.mxu0 0.0
  %2205 = vmatpush2.msra.mxu0 0.0
  %2206 = vmatprep.subr.mxu0 0.0
  %2207 = vmatpush2.msra.mxu0 0.0
  %2208 = vmatprep.subr.mxu0 0.0
  %2209 = vmatpush2.msra.mxu0 0.0
  %2210 = vmatprep.subr.mxu0 0.0
  %2211 = vmatpush2.msra.mxu0 0.0
  %2212 = vmatprep.subr.mxu0 0.0
  %2213 = vmatpush2.msra.mxu0 0.0
  %2214 = vmatprep.subr.mxu0 0.0
  %2215 = vmatpush2.msra.mxu0 0.0
  %2216 = vmatprep.subr.mxu0 0.0
  %2217 = vmatpush2.msra.mxu0 0.0
  %2218 = vmatprep.subr.mxu0 0.0
  %2219 = vmatpush2.msra.mxu0 0.0
  %2220 = vmatprep.subr.mxu0 0.0
  %2221 = vmatpush2.msra.mxu0 0.0
  %2222 = vmatprep.subr.mxu0 0.0
  %2223 = vmatpush2.msra.mxu0 0.0
  %2224 = vmatprep.subr.mxu0 0.0
  %2225 = vmatpush2.msra.mxu0 0.0
  %2226 = vmatprep.subr.mxu0 0.0
  %2227 = vmatpush2.msra.mxu0 0.0
  %2228 = vmatprep.mubr.f32.mxu0 0.0
  %v2229 = vand.u32 %v1775, 4294901760
  %2230 = vmatmul.mubr.f32.gmra.mxu0 %v2229
  %v2231 = vpop.f32.mrf.mxu0
  %v2232 = vadd.f32 %v2137, %v2231
  %v2233 = vpop.f32.mrf.mxu0
  %2234 = vdwg.mxu0
  %2235 = vmatprep.subr.mxu0 0.0
  %2236 = vmatpush1.msra.mxu0 0.0
  %2237 = vmatprep.subr.mxu0 0.0
  %2238 = vmatpush1.msra.mxu0 0.0
  %2239 = vmatprep.subr.mxu0 0.0
  %2240 = vmatpush1.msra.mxu0 0.0
  %2241 = vmatprep.subr.mxu0 0.0
  %2242 = vmatpush1.msra.mxu0 0.0
  %2243 = vmatprep.subr.mxu0 0.0
  %2244 = vmatpush1.msra.mxu0 0.0
  %2245 = vmatprep.subr.mxu0 0.0
  %2246 = vmatpush1.msra.mxu0 0.0
  %2247 = vmatprep.subr.mxu0 0.0
  %2248 = vmatpush1.msra.mxu0 0.0
  %2249 = vmatprep.subr.mxu0 0.0
  %2250 = vmatpush1.msra.mxu0 0.0
  %2251 = vmatprep.subr.mxu0 0.0
  %v2252 = vand.u32 %v1758, 4294901760
  %2253 = vmatpush1.msra.mxu0 %v2252
  %2254 = vmatprep.subr.mxu0 0.0
  %v2255 = vand.u32 %v1757, 4294901760
  %2256 = vmatpush1.msra.mxu0 %v2255
  %2257 = vmatprep.subr.mxu0 0.0
  %v2258 = vand.u32 %v1756, 4294901760
  %2259 = vmatpush1.msra.mxu0 %v2258
  %2260 = vmatprep.subr.mxu0 0.0
  %v2261 = vand.u32 %v1755, 4294901760
  %2262 = vmatpush1.msra.mxu0 %v2261
  %2263 = vmatprep.subr.mxu0 0.0
  %v2264 = vand.u32 %v1754, 4294901760
  %2265 = vmatpush1.msra.mxu0 %v2264
  %2266 = vmatprep.subr.mxu0 0.0
  %v2267 = vand.u32 %v1753, 4294901760
  %2268 = vmatpush1.msra.mxu0 %v2267
  %2269 = vmatprep.subr.mxu0 0.0
  %v2270 = vand.u32 %v1752, 4294901760
  %2271 = vmatpush1.msra.mxu0 %v2270
  %2272 = vmatprep.subr.mxu0 0.0
  %v2273 = vand.u32 %v1751, 4294901760
  %2274 = vmatpush1.msra.mxu0 %v2273
  %2275 = vmatprep.subr.mxu0 0.0
  %2276 = vmatpush2.msra.mxu0 0.0
  %2277 = vmatprep.subr.mxu0 0.0
  %2278 = vmatpush2.msra.mxu0 0.0
  %2279 = vmatprep.subr.mxu0 0.0
  %2280 = vmatpush2.msra.mxu0 0.0
  %2281 = vmatprep.subr.mxu0 0.0
  %2282 = vmatpush2.msra.mxu0 0.0
  %2283 = vmatprep.subr.mxu0 0.0
  %2284 = vmatpush2.msra.mxu0 0.0
  %2285 = vmatprep.subr.mxu0 0.0
  %2286 = vmatpush2.msra.mxu0 0.0
  %2287 = vmatprep.subr.mxu0 0.0
  %2288 = vmatpush2.msra.mxu0 0.0
  %2289 = vmatprep.subr.mxu0 0.0
  %2290 = vmatpush2.msra.mxu0 0.0
  %2291 = vmatprep.subr.mxu0 0.0
  %2292 = vmatpush2.msra.mxu0 0.0
  %2293 = vmatprep.subr.mxu0 0.0
  %2294 = vmatpush2.msra.mxu0 0.0
  %2295 = vmatprep.subr.mxu0 0.0
  %2296 = vmatpush2.msra.mxu0 0.0
  %2297 = vmatprep.subr.mxu0 0.0
  %2298 = vmatpush2.msra.mxu0 0.0
  %2299 = vmatprep.subr.mxu0 0.0
  %2300 = vmatpush2.msra.mxu0 0.0
  %2301 = vmatprep.subr.mxu0 0.0
  %2302 = vmatpush2.msra.mxu0 0.0
  %2303 = vmatprep.subr.mxu0 0.0
  %2304 = vmatpush2.msra.mxu0 0.0
  %2305 = vmatprep.subr.mxu0 0.0
  %2306 = vmatpush2.msra.mxu0 0.0
  %2307 = vmatprep.mubr.f32.mxu0 0.0
  %v2308 = vand.u32 %v1775, 4294901760
  %2309 = vmatmul.mubr.f32.gmra.mxu0 %v2308
  %v2310 = vpop.f32.mrf.mxu0
  %v2311 = vadd.f32 %v2232, %v2310
  %v2312 = vpop.f32.mrf.mxu0
  %2313 = vdwg.mxu0
  %v2315 = vrot.slane %v2311, 4
  %2316 = vrot.lane.b32.xlu0 %v2315, 64
  %v2317 = vpop.permute.xlu0 %2316
  %2319 = vrot.lane.b32.xlu0 %v2311, 64
  %v2320 = vpop.permute.xlu0 %2319
  %2322 = vrot.lane.b32.xlu0 %v2315, 96
  %v2323 = vpop.permute.xlu0 %2322
  %2326 = vrot.lane.b32.xlu0 %v1191, 64
  %v2327 = vpop.permute.xlu0 %2326
  %v2329 = vsel %vm653, %v2311, %v2317
  %v2330 = vsel %vm1261, %v2320, %v2323
  %v2331 = vsel %vm653, %v2330, %v2327
  %v2334 = vcombine.low %v2329, %v2331
  %2336 = vst [vmem:[%s7] sm:$0xff] %v2334
  // Predicated region
  $region30: #{pair_vae_forward.1} parent=0 // pred_check
    _
  $region31: #{pair_vae_forward.1} parent=0 // pred_check_branch
    %2338 = sbr.rel (0) target = $region33
  $region32: #{pair_vae_forward.1} parent=0 // pred_region
    _
  $region33: #{pair_vae_forward.1} parent=0 // pred_fallthru
    _
  // Predicated region
  $region34: #{pair_vae_forward.1} parent=0 // pred_check
    _
  $region35: #{pair_vae_forward.1} parent=0 // pred_check_branch
    %2340 = sbr.rel (0) target = $region37
  $region36: #{pair_vae_forward.1} parent=0 // pred_region
    _
  $region37: #{pair_vae_forward.1} parent=0 // pred_fallthru
    _

</llo_original>
